<compile_context>
chip_gen: v7x
topology: tpu7x:2x2x1
jax: 0.10.0
libtpu: 0.0.40
codegen_flags: <defaults>
</compile_context>

<pallas_src>
import jax
import jax.numpy as jnp
from jax.experimental import pallas as pl
from jax.experimental.pallas import tpu as pltpu


# ---------------------------------------------------------------------------
# Pallas kernel: fused fake-quant + implicit-im2col conv3x3 + bias + ReLU
# ---------------------------------------------------------------------------
def _fq_conv3x3_kernel(qparams_ref, x_ref, w_ref, b_ref, out_ref):
    """One grid step = one (n, TH-row) output block.

    qparams_ref : SMEM f32[3] = [scale, 1/scale, zero_point]
    x_ref       : (1, H+2, W+2, Cin)  f32   whole padded image n (resident)
    w_ref       : (9*Cin, cpad)       bf16  weights, taps folded into K (resident)
    b_ref       : (1, cpad)           f32   bias (Cout zero-padded to cpad)
    out_ref     : (1, TH, W, cpad)    f32   output block (written exactly once)
    """
    yb = pl.program_id(1)
    th = out_ref.shape[1]
    w_out = out_ref.shape[2]
    cpad = out_ref.shape[3]
    cin = x_ref.shape[3]

    scale = qparams_ref[0]
    inv_scale = qparams_ref[1]
    zp = qparams_ref[2]

    # --- slice the (TH+2)-row halo out of the resident padded image ---------
    y0 = pl.multiple_of(yb * th, th)
    x = x_ref[0, pl.ds(y0, th + 2), :, :]                  # (TH+2, W+2, Cin) f32

    # --- QuantStub: fake-quantize once per loaded element (f32 math) --------
    # Feed (q - zp) to the MXU: integers <= 255 are exact in bf16, so the
    # quantization grid is preserved; `* scale` is applied in the f32 epilogue.
    q = jnp.clip(jnp.round(x * inv_scale + zp), 0.0, 255.0)
    xq = (q - zp).astype(jnp.bfloat16)                     # (TH+2, W+2, Cin)

    # --- implicit im2col: fold the 3x3 taps into K = 9*Cin ------------------
    # Order (dy, dx, cin) matches the wrapper's weight flattening.
    patches = jnp.concatenate(
        [xq[dy:dy + th, dx:dx + w_out, :]
         for dy in range(3) for dx in range(3)],
        axis=-1)                                           # (TH, W, 9*Cin)
    patches = patches.reshape(th * w_out, 9 * cin)

    acc = jnp.dot(patches, w_ref[...],
                  preferred_element_type=jnp.float32)      # (TH*W, cpad) f32
    acc = acc.reshape(th, w_out, cpad)

    # --- epilogue: deferred activation scale + bias + ReLU (all f32) --------
    out_ref[0] = jnp.maximum(acc * scale + b_ref[0], 0.0)

    # TODO(synk): DeQuantStub is the identity in fake-quant (float) mode; after
    # torch.quantization.convert it would map int8 -> float, which never arises
    # here since everything stays f32.


# ---------------------------------------------------------------------------
# Wrapper
# ---------------------------------------------------------------------------
def _pick_row_block(H, W, cpad):
    """Largest divisor of H whose double-buffered output block stays small."""
    budget = 8 * 1024 * 1024                               # per-buffer out budget
    max_th = max(1, budget // (W * cpad * 4 * 2))
    th = 1
    for d in range(1, H + 1):
        if H % d == 0 and d <= max_th:
            th = d
    return th


def fake_quant_conv_relu(x_nchw, weight, bias, scale, zero_point):
    """FakeQuantizationModel forward: fake-quant -> Conv3x3(pad=1)+bias+ReLU -> identity.

    x_nchw: [N, Cin, H, W] f32; weight: [Cout, Cin, 3, 3]; bias: [Cout].
    Returns [N, Cout, H, W] f32.
    """
    N, Cin, H, W = x_nchw.shape
    Cout, _, KH, KW = weight.shape
    assert (KH, KW) == (3, 3), "representative HRNet stem block is 3x3"

    # torch uses an integer zero_point; keep it integral & clamped so the
    # zero-padded border fake-quantizes exactly back to zero.
    zero_point = float(min(max(round(float(zero_point)), 0), 255))
    scale = float(scale)

    cpad = ((Cout + 127) // 128) * 128      # lane-dense output / full MXU N
    th = _pick_row_block(H, W, cpad)

    # --- glue (XLA): NCHW -> NHWC, zero pad H and W by 1 ----------------------
    # TODO(synk): if the surrounding model were channels-last these transposes
    # (and the output one) would disappear; kept to match the NCHW interface.
    x = jnp.transpose(x_nchw, (0, 2, 3, 1)).astype(jnp.float32)
    x_pad = jnp.pad(x, ((0, 0), (1, 1), (1, 1), (0, 0)))   # [N, H+2, W+2, Cin]

    # weight [Cout, Cin, 3, 3] -> (dy, dx, cin, cpad) -> (9*Cin, cpad) bf16
    w = jnp.transpose(weight, (2, 3, 1, 0)).astype(jnp.float32)
    w = jnp.pad(w, ((0, 0), (0, 0), (0, 0), (0, cpad - Cout)))
    w = w.reshape(9 * Cin, cpad).astype(jnp.bfloat16)
    b = jnp.pad(bias.astype(jnp.float32), (0, cpad - Cout)).reshape(1, cpad)

    qparams = jnp.array([scale, 1.0 / scale, zero_point], dtype=jnp.float32)

    grid = (N, H // th)

    cost = pl.CostEstimate(
        flops=2 * N * H * W * 9 * Cin * cpad,
        transcendentals=0,
        bytes_accessed=(int(x_pad.size) * 4                # each image read once
                        + int(w.size) * 2 + int(b.size) * 4
                        + N * H * W * cpad * 4))

    # VMEM budget (double-buffered x image + out block, resident w/b) + headroom,
    # kept below v7x's 64 MiB physical VMEM.
    vmem_need = (2 * (H + 2) * (W + 2) * Cin * 4
                 + 2 * th * W * cpad * 4
                 + 9 * Cin * cpad * 2 + cpad * 4)
    vmem_limit = int(min(max(2 * vmem_need + (4 << 20), 16 << 20), 48 << 20))

    out = pl.pallas_call(
        _fq_conv3x3_kernel,
        out_shape=jax.ShapeDtypeStruct((N, H, W, cpad), jnp.float32),
        grid_spec=pltpu.PrefetchScalarGridSpec(
            num_scalar_prefetch=0,
            grid=grid,
            in_specs=[
                pl.BlockSpec(memory_space=pltpu.SMEM),                               # qparams
                pl.BlockSpec((1, H + 2, W + 2, Cin), lambda n, y: (n, 0, 0, 0)),     # padded image (per n)
                pl.BlockSpec((9 * Cin, cpad), lambda n, y: (0, 0)),                  # weights (resident)
                pl.BlockSpec((1, cpad), lambda n, y: (0, 0)),                        # bias (resident)
            ],
            out_specs=pl.BlockSpec((1, th, W, cpad), lambda n, y: (n, y, 0, 0)),
        ),
        compiler_params=pltpu.CompilerParams(
            dimension_semantics=("parallel", "parallel"),
            vmem_limit_bytes=vmem_limit),
        cost_estimate=cost,
    )(qparams, x_pad, w, b)

    # drop the Cout padding, back to NCHW
    out = out[:, :, :, :Cout]
    return jnp.transpose(out, (0, 3, 1, 2))                # [N, Cout, H, W]


# ---------------------------------------------------------------------------
# Pure-JAX reference for verification
# ---------------------------------------------------------------------------
def _ref(x_nchw, weight, bias, scale, zero_point):
    inv_scale = 1.0 / scale
    q = jnp.clip(jnp.round(x_nchw * inv_scale + zero_point), 0.0, 255.0)
    xq = (q - zero_point) * scale
    y = jax.lax.conv_general_dilated(
        xq, weight, window_strides=(1, 1), padding="SAME",
        dimension_numbers=("NCHW", "OIHW", "NCHW"))
    y = y + bias.reshape(1, -1, 1, 1)
    return jnp.maximum(y, 0.0)


if __name__ == "__main__":
    key = jax.random.PRNGKey(0)
    k_x, k_w, k_b = jax.random.split(key, 3)

    N, Cin, H, W = 2, 4, 16, 16
    Cout = 8

    x = jax.random.normal(k_x, (N, Cin, H, W), dtype=jnp.float32)
    weight = 0.1 * jax.random.normal(k_w, (Cout, Cin, 3, 3), dtype=jnp.float32)
    bias = 0.05 * jax.random.normal(k_b, (Cout,), dtype=jnp.float32)

    # Deterministic min/max observer quant params (quint8, [0, 255]).
    x_min = float(jnp.min(x))
    x_max = float(jnp.max(x))
    scale = max((x_max - x_min) / 255.0, 1e-8)
    zero_point = float(min(max(round(-x_min / scale), 0), 255))

    out = fake_quant_conv_relu(x, weight, bias, scale, zero_point)
    out = jax.block_until_ready(out)

    ref = _ref(x, weight, bias, scale, zero_point)
    assert out.shape == (N, Cout, H, W)
    # Activation quant grid is exact (f32 path); bf16 weights are the only
    # approximation vs the f32 reference.
    err = float(jnp.max(jnp.abs(out - ref)))
    assert err < 2e-2, f"mismatch vs reference: max abs err = {err}"

    print("KERNEL_OK")
</pallas_src>

<mosaic_0001>
module attributes {stable_mosaic.version = 11 : i64} {
  func.func @_fq_conv3x3_kernel(%arg0: i32, %arg1: i32, %arg2: memref<3xf32, #tpu.memory_space<smem>>, %arg3: memref<1x18x18x4xf32, #tpu.memory_space<vmem>>, %arg4: memref<36x128xbf16, #tpu.memory_space<vmem>>, %arg5: memref<1x128xf32, #tpu.memory_space<vmem>>, %arg6: memref<1x16x16x128xf32, #tpu.memory_space<vmem>>) attributes {dimension_semantics = [#tpu.dimension_semantics<parallel>, #tpu.dimension_semantics<parallel>], iteration_bounds = array<i64: 2, 1>, scalar_prefetch = 0 : i64, scratch_operands = 0 : i64, tpu.core_type = #tpu.core_type<tc>, window_params = [{transform_indices = @transform_0, window_bounds = array<i64: 3>}, {transform_indices = @transform_1, window_bounds = array<i64: 1, 18, 18, 4>}, {pipeline_mode = #tpu.pipeline_mode<synchronous>, transform_indices = @transform_2, window_bounds = array<i64: 36, 128>}, {pipeline_mode = #tpu.pipeline_mode<synchronous>, transform_indices = @transform_3, window_bounds = array<i64: 1, 128>}, {transform_indices = @transform_4, window_bounds = array<i64: 1, 16, 16, 128>}]} {
    %c0 = arith.constant 0 : index
    %0 = memref.load %arg2[%c0] : memref<3xf32, #tpu.memory_space<smem>>
    %c1 = arith.constant 1 : index
    %1 = memref.load %arg2[%c1] : memref<3xf32, #tpu.memory_space<smem>>
    %c2 = arith.constant 2 : index
    %2 = memref.load %arg2[%c2] : memref<3xf32, #tpu.memory_space<smem>>
    %c16_i32 = arith.constant 16 : i32
    %3 = arith.muli %arg1, %c16_i32 : i32
    %4 = tpu.assume_multiple %3, 16 : i32
    %c0_0 = arith.constant 0 : index
    %5 = arith.index_cast %4 : i32 to index
    %c0_1 = arith.constant 0 : index
    %c0_2 = arith.constant 0 : index
    %6 = vector.load %arg3[%c0_0, %5, %c0_1, %c0_2] : memref<1x18x18x4xf32, #tpu.memory_space<vmem>>, vector<1x18x18x4xf32>
    %7 = vector.shape_cast %6 : vector<1x18x18x4xf32> to vector<18x18x4xf32>
    %8 = vector.broadcast %1 : f32 to vector<18x18x4xf32>
    %9 = arith.mulf %7, %8 : vector<18x18x4xf32>
    %10 = vector.broadcast %2 : f32 to vector<18x18x4xf32>
    %11 = arith.addf %9, %10 : vector<18x18x4xf32>
    %12 = math.roundeven %11 : vector<18x18x4xf32>
    %cst = arith.constant 0.000000e+00 : f32
    %cst_3 = arith.constant 2.550000e+02 : f32
    %13 = vector.broadcast %cst : f32 to vector<18x18x4xf32>
    %14 = arith.maximumf %13, %12 : vector<18x18x4xf32>
    %15 = vector.broadcast %cst_3 : f32 to vector<18x18x4xf32>
    %16 = arith.minimumf %15, %14 : vector<18x18x4xf32>
    %17 = vector.broadcast %2 : f32 to vector<18x18x4xf32>
    %18 = arith.subf %16, %17 : vector<18x18x4xf32>
    %19 = arith.truncf %18 : vector<18x18x4xf32> to vector<18x18x4xbf16>
    %20 = vector.extract_strided_slice %19 {offsets = [0, 0, 0], sizes = [16, 16, 4], strides = [1, 1, 1]} : vector<18x18x4xbf16> to vector<16x16x4xbf16>
    %21 = vector.extract_strided_slice %19 {offsets = [0, 1, 0], sizes = [16, 16, 4], strides = [1, 1, 1]} : vector<18x18x4xbf16> to vector<16x16x4xbf16>
    %22 = vector.extract_strided_slice %19 {offsets = [0, 2, 0], sizes = [16, 16, 4], strides = [1, 1, 1]} : vector<18x18x4xbf16> to vector<16x16x4xbf16>
    %23 = vector.extract_strided_slice %19 {offsets = [1, 0, 0], sizes = [16, 16, 4], strides = [1, 1, 1]} : vector<18x18x4xbf16> to vector<16x16x4xbf16>
    %24 = vector.extract_strided_slice %19 {offsets = [1, 1, 0], sizes = [16, 16, 4], strides = [1, 1, 1]} : vector<18x18x4xbf16> to vector<16x16x4xbf16>
    %25 = vector.extract_strided_slice %19 {offsets = [1, 2, 0], sizes = [16, 16, 4], strides = [1, 1, 1]} : vector<18x18x4xbf16> to vector<16x16x4xbf16>
    %26 = vector.extract_strided_slice %19 {offsets = [2, 0, 0], sizes = [16, 16, 4], strides = [1, 1, 1]} : vector<18x18x4xbf16> to vector<16x16x4xbf16>
    %27 = vector.extract_strided_slice %19 {offsets = [2, 1, 0], sizes = [16, 16, 4], strides = [1, 1, 1]} : vector<18x18x4xbf16> to vector<16x16x4xbf16>
    %28 = vector.extract_strided_slice %19 {offsets = [2, 2, 0], sizes = [16, 16, 4], strides = [1, 1, 1]} : vector<18x18x4xbf16> to vector<16x16x4xbf16>
    %29 = tpu.concatenate %20, %21, %22, %23, %24, %25, %26, %27, %28 in 2 : vector<16x16x4xbf16>, vector<16x16x4xbf16>, vector<16x16x4xbf16>, vector<16x16x4xbf16>, vector<16x16x4xbf16>, vector<16x16x4xbf16>, vector<16x16x4xbf16>, vector<16x16x4xbf16>, vector<16x16x4xbf16> -> vector<16x16x36xbf16>
    %30 = vector.shape_cast %29 : vector<16x16x36xbf16> to vector<256x36xbf16>
    %c0_4 = arith.constant 0 : index
    %c0_5 = arith.constant 0 : index
    %31 = vector.load %arg4[%c0_4, %c0_5] : memref<36x128xbf16, #tpu.memory_space<vmem>>, vector<36x128xbf16>
    %cst_6 = arith.constant dense<0.000000e+00> : vector<256x128xf32>
    %32 = tpu.matmul %30, %31, %cst_6 {dimension_numbers = #tpu.dot_dimension_numbers<[1], [0], [0], [1], [0, 0, 1, 1], [], []>} : vector<256x36xbf16>, vector<36x128xbf16>, vector<256x128xf32> -> vector<256x128xf32>
    %33 = vector.shape_cast %32 : vector<256x128xf32> to vector<16x16x128xf32>
    %34 = vector.broadcast %0 : f32 to vector<16x16x128xf32>
    %35 = arith.mulf %33, %34 : vector<16x16x128xf32>
    %c0_7 = arith.constant 0 : index
    %c0_8 = arith.constant 0 : index
    %36 = vector.load %arg5[%c0_7, %c0_8] : memref<1x128xf32, #tpu.memory_space<vmem>>, vector<1x128xf32>
    %37 = vector.shape_cast %36 : vector<1x128xf32> to vector<128xf32>
    %38 = vector.shape_cast %37 : vector<128xf32> to vector<1x1x128xf32>
    %39 = vector.broadcast %38 : vector<1x1x128xf32> to vector<16x16x128xf32>
    %40 = arith.addf %35, %39 : vector<16x16x128xf32>
    %cst_9 = arith.constant 0.000000e+00 : f32
    %41 = vector.broadcast %cst_9 : f32 to vector<16x16x128xf32>
    %42 = arith.maximumf %40, %41 : vector<16x16x128xf32>
    %c0_10 = arith.constant 0 : index
    %c0_11 = arith.constant 0 : index
    %c0_12 = arith.constant 0 : index
    %c0_13 = arith.constant 0 : index
    %43 = vector.load %arg6[%c0_10, %c0_11, %c0_12, %c0_13] : memref<1x16x16x128xf32, #tpu.memory_space<vmem>>, vector<1x16x16x128xf32>
    %44 = vector.shape_cast %43 : vector<1x16x16x128xf32> to vector<16x16x128xf32>
    %45 = vector.shape_cast %42 : vector<16x16x128xf32> to vector<1x16x16x128xf32>
    tpu.vector_store %arg6[%c0_10, %c0_11, %c0_12, %c0_13], %45 {strides = array<i32>} : memref<1x16x16x128xf32, #tpu.memory_space<vmem>>, vector<1x16x16x128xf32>,
    return
  }
  func.func @transform_0(%arg0: i32, %arg1: i32) -> i32 {
    %c0_i32 = arith.constant 0 : i32
    %c0_i32_0 = arith.constant 0 : i32
    return %c0_i32 : i32
  }
  func.func @transform_1(%arg0: i32, %arg1: i32) -> (i32, i32, i32, i32) {
    %c0_i32 = arith.constant 0 : i32
    %c0_i32_0 = arith.constant 0 : i32
    %c0_i32_1 = arith.constant 0 : i32
    %c0_i32_2 = arith.constant 0 : i32
    return %arg0, %c0_i32, %c0_i32_0, %c0_i32_1 : i32, i32, i32, i32
  }
  func.func @transform_2(%arg0: i32, %arg1: i32) -> (i32, i32) {
    %c0_i32 = arith.constant 0 : i32
    %c0_i32_0 = arith.constant 0 : i32
    %c0_i32_1 = arith.constant 0 : i32
    return %c0_i32, %c0_i32_0 : i32, i32
  }
  func.func @transform_3(%arg0: i32, %arg1: i32) -> (i32, i32) {
    %c0_i32 = arith.constant 0 : i32
    %c0_i32_0 = arith.constant 0 : i32
    %c0_i32_1 = arith.constant 0 : i32
    return %c0_i32, %c0_i32_0 : i32, i32
  }
  func.func @transform_4(%arg0: i32, %arg1: i32) -> (i32, i32, i32, i32) {
    %c0_i32 = arith.constant 0 : i32
    %c0_i32_0 = arith.constant 0 : i32
    %c0_i32_1 = arith.constant 0 : i32
    return %arg0, %arg1, %c0_i32, %c0_i32_0 : i32, i32, i32, i32
  }
}

</mosaic_0001>

<llo_original>
// kernel: tpu_custom_call.1
$region0: #{tpu_custom_call.1}
  #allocation0 [shape = 'u32[]', space=smem, size = 0x4, offset = 0x4, fixed_abs, tag = 'smem constant byte address 0x4 - core index']
  #allocation1 [shape = 'u32[144,128]{1,0:T(1,128)}', space=vmem, size = 0x12000, scoped, tag = 'internal scratch']
  %s0 = inlined_call_operand.vmem [shape: f32[3], index: 0, kind: input, shape index: {}]
  %s1 = inlined_call_operand.vmem [shape: f32[2,18,18,4], index: 1, kind: input, shape index: {}]
  %s2 = inlined_call_operand.vmem [shape: bf16[36,128], index: 2, kind: input, shape index: {}]
  %s3 = inlined_call_operand.vmem [shape: f32[1,128], index: 3, kind: input, shape index: {}]
  %s4 = inlined_call_operand.hbm [shape: f32[2,16,16,128], index: 4, kind: output, shape index: {}]
  %s5 = sld [smem:[#allocation0]]
  $region53: #{tpu_custom_call.1} parent=0
    _
  %s7 = ssub.s32 1, %s5
  %s8 = scalar_select 0, %s7, %s5
  $region1: #{tpu_custom_call.1} parent=0
    #allocation2 [shape = 'u8[512]{0}', space=smem, size = 0x200, scoped, tag = 'input window, operand 0, single buffered']
    #allocation3 [shape = 's32[2]{0}', space=sflag, size = 0x8, scoped, tag = 'scoped memory for tpu_custom_call.1']
    #allocation4 [shape = 's32[2]{0}', space=sflag, size = 0x8, scoped, tag = 'scoped memory for tpu_custom_call.1']
    #allocation5 [shape = 'u8[262144]{0}', space=vmem, size = 0x40000, scoped, tag = 'output window, operand 0']
    %9 = vsyncpa [#allocation4], 0
    %10 = vsyncpa [#allocation3], 0
    %s11 = scalar_lea.sflag [#allocation3], 1
    %12 = vsyncpa %s11, 0
    loop: start=0, step=1, limit=4
    $region2: #{tpu_custom_call.1} parent=1 // loop_pre_header
      _
    $region3: #{tpu_custom_call.1} parent=1 // loop_header
      %s14 = sphi 0, %s18
      %p15 = scmp.ge.s32.totalorder %s14, 4
      %s21 = sphi 0, %s33
      %s22 = sphi 0, %s29
      %s23 = sphi 0, %s21
      %s24 = sphi 0, %s22
      %s25 = sphi 0, %s23
      %s26 = sphi 0, %s24
      %s34 = sphi 0, %s34
      %s36 = sphi 0, %s34
      %s37 = sphi 0, %s36
      %s51 = sphi 0, %s37
      %s57 = sphi 0, %s59
      %s60 = sphi 0, %s57
      %s61 = sphi 0, %s60
      %s77 = sphi 0, %s61
      %s81 = sphi 0, %s81
      %s83 = sphi 0, %s81
      %s84 = sphi 0, %s83
      %s98 = sphi 0, %s84
      %s102 = sphi 0, %s102
      %s104 = sphi 0, %s102
      %s105 = sphi 0, %s104
      %s119 = sphi 0, %s105
      %s127 = sphi 0, %s129
      %s130 = sphi 0, %s127
      %s131 = sphi 0, %s130
      %s147 = sphi 0, %s131
    $region4: #{tpu_custom_call.1} parent=1 // loop_header_branch
      %17 = sbr.rel (%p15) target = $region8
    $region5: #{tpu_custom_call.1} parent=1 // loop_body
      %s19 = ssub.s32 %s14, 1
      %s20 = ssub.s32 %s14, 2
      %s27 = sadd.s32 1, %s22
      %p28 = scmp.ge.s32.totalorder %s27, 1
      %s29 = scalar_select %p28, 0, %s27
      %s30 = sadd.s32 1, %s21
      %s31 = scalar_select %p28, %s30, %s21
      %p32 = scmp.ge.s32.totalorder %s31, 2
      %s33 = scalar_select %p32, 0, %s31
      %s35 = sadd.s32 %s34, 1
      %p38 = scmp.eq.s32.totalorder %s14, 1
      %p39 = scmp.ne.s32.totalorder %s34, %s36
      %p40 = scmp.eq.s32.totalorder %s14, 0
      %p41 = por %p39, %p40
      %p42 = scmp.ne.s32.totalorder %s34, %s36
      %p43 = scmp.eq.s32.totalorder %s19, 1
      %p44 = por %p42, %p43
      %p45 = scmp.ne.s32.totalorder %s36, %s37
      %p46 = scmp.eq.s32.totalorder %s19, 0
      %p47 = por %p45, %p46
      %p48 = scmp.ne.s32.totalorder %s36, %s37
      %p49 = scmp.eq.s32.totalorder %s20, 1
      %p50 = por %p48, %p49
      %p52 = scmp.ne.s32.totalorder %s37, %s51
      %p53 = scmp.eq.s32.totalorder %s20, 0
      %p54 = por %p52, %p53
      %s55 = ssub.s32 %s21, %s33
      %p56 = scmp.eq.s32.totalorder %s55, 0
      %s58 = sadd.s32 %s57, 1
      %s59 = scalar_select %p56, %s57, %s58
      %p62 = pneg %p56
      %p63 = scmp.eq.s32.totalorder %s14, 1
      %p64 = por %p62, %p63
      %p65 = scmp.ne.s32.totalorder %s57, %s60
      %p66 = scmp.eq.s32.totalorder %s14, 0
      %p67 = por %p65, %p66
      %p68 = scmp.ne.s32.totalorder %s57, %s60
      %p69 = scmp.eq.s32.totalorder %s19, 1
      %p70 = por %p68, %p69
      %p71 = scmp.ne.s32.totalorder %s60, %s61
      %p72 = scmp.eq.s32.totalorder %s19, 0
      %p73 = por %p71, %p72
      %p74 = scmp.ne.s32.totalorder %s60, %s61
      %p75 = scmp.eq.s32.totalorder %s20, 1
      %p76 = por %p74, %p75
      %p78 = scmp.ne.s32.totalorder %s61, %s77
      %p79 = scmp.eq.s32.totalorder %s20, 0
      %p80 = por %p78, %p79
      %s82 = sadd.s32 %s81, 1
      %p85 = scmp.eq.s32.totalorder %s14, 1
      %p86 = scmp.ne.s32.totalorder %s81, %s83
      %p87 = scmp.eq.s32.totalorder %s14, 0
      %p88 = por %p86, %p87
      %p89 = scmp.ne.s32.totalorder %s81, %s83
      %p90 = scmp.eq.s32.totalorder %s19, 1
      %p91 = por %p89, %p90
      %p92 = scmp.ne.s32.totalorder %s83, %s84
      %p93 = scmp.eq.s32.totalorder %s19, 0
      %p94 = por %p92, %p93
      %p95 = scmp.ne.s32.totalorder %s83, %s84
      %p96 = scmp.eq.s32.totalorder %s20, 1
      %p97 = por %p95, %p96
      %p99 = scmp.ne.s32.totalorder %s84, %s98
      %p100 = scmp.eq.s32.totalorder %s20, 0
      %p101 = por %p99, %p100
      %s103 = sadd.s32 %s102, 1
      %p106 = scmp.eq.s32.totalorder %s14, 1
      %p107 = scmp.ne.s32.totalorder %s102, %s104
      %p108 = scmp.eq.s32.totalorder %s14, 0
      %p109 = por %p107, %p108
      %p110 = scmp.ne.s32.totalorder %s102, %s104
      %p111 = scmp.eq.s32.totalorder %s19, 1
      %p112 = por %p110, %p111
      %p113 = scmp.ne.s32.totalorder %s104, %s105
      %p114 = scmp.eq.s32.totalorder %s19, 0
      %p115 = por %p113, %p114
      %p116 = scmp.ne.s32.totalorder %s104, %s105
      %p117 = scmp.eq.s32.totalorder %s20, 1
      %p118 = por %p116, %p117
      %p120 = scmp.ne.s32.totalorder %s105, %s119
      %p121 = scmp.eq.s32.totalorder %s20, 0
      %p122 = por %p120, %p121
      %s123 = ssub.s32 %s21, %s33
      %s124 = ssub.s32 %s22, %s29
      %s125 = sor.u32 %s123, %s124
      %p126 = scmp.eq.s32.totalorder %s125, 0
      %s128 = sadd.s32 %s127, 1
      %s129 = scalar_select %p126, %s127, %s128
      %p132 = pneg %p126
      %p133 = scmp.eq.s32.totalorder %s14, 1
      %p134 = por %p132, %p133
      %p135 = scmp.ne.s32.totalorder %s127, %s130
      %p136 = scmp.eq.s32.totalorder %s14, 0
      %p137 = por %p135, %p136
      %p138 = scmp.ne.s32.totalorder %s127, %s130
      %p139 = scmp.eq.s32.totalorder %s19, 1
      %p140 = por %p138, %p139
      %p141 = scmp.ne.s32.totalorder %s130, %s131
      %p142 = scmp.eq.s32.totalorder %s19, 0
      %p143 = por %p141, %p142
      %p144 = scmp.ne.s32.totalorder %s130, %s131
      %p145 = scmp.eq.s32.totalorder %s20, 1
      %p146 = por %p144, %p145
      %p148 = scmp.ne.s32.totalorder %s131, %s147
      %p149 = scmp.eq.s32.totalorder %s20, 0
      %p150 = por %p148, %p149
      %p151 = scmp.le.s32.totalorder 1, %s14
      %p152 = scmp.lt.s32.totalorder %s14, 3
      %p153 = pnand %p151, %p152
      %p154 = pneg %p153
      // Predicated region
      $region9: #{tpu_custom_call.1} parent=5 // pred_check
        _
      $region10: #{tpu_custom_call.1} parent=5 // pred_check_branch
        %156 = sbr.rel (%p153) target = $region12
      $region11: #{tpu_custom_call.1} parent=5 // pred_region
        %s157 = ssub.s32 %s14, 1
        // Predicated region
        $region13: #{tpu_custom_call.1} parent=11 // pred_check
          %p158 = pneg %p47
        $region14: #{tpu_custom_call.1} parent=11 // pred_check_branch
          %160 = sbr.rel (%p158) target = $region16
        $region15: #{tpu_custom_call.1} parent=11 // pred_region
          %s162 = ssub.s32 16, 16
          %163 = vsyncadd [#allocation4], %s162
          %s165 = sshll.u32 %s0, 4
          %s166 = int_to_ptr.vmem [resolvable:$true] %s165
          %168 = dma.vmem_to_smem %s166, 16, [#allocation2], [#allocation4]
        $region16: #{tpu_custom_call.1} parent=11 // pred_fallthru
          _
        // Predicated region
        $region17: #{tpu_custom_call.1} parent=11 // pred_check
          %p169 = pneg %p94
        $region18: #{tpu_custom_call.1} parent=11 // pred_check_branch
          %171 = sbr.rel (%p169) target = $region20
        $region19: #{tpu_custom_call.1} parent=11 // pred_region
          _
        $region20: #{tpu_custom_call.1} parent=11 // pred_fallthru
          _
        // Predicated region
        $region21: #{tpu_custom_call.1} parent=11 // pred_check
          %p172 = pneg %p115
        $region22: #{tpu_custom_call.1} parent=11 // pred_check_branch
          %174 = sbr.rel (%p172) target = $region24
        $region23: #{tpu_custom_call.1} parent=11 // pred_region
          _
        $region24: #{tpu_custom_call.1} parent=11 // pred_fallthru
          _
      $region12: #{tpu_custom_call.1} parent=5 // pred_fallthru
        _
      %p175 = scmp.lt.s32.totalorder %s14, 2
      // Predicated region
      $region25: #{tpu_custom_call.1} parent=5 // pred_check
        %p176 = pneg %p175
      $region26: #{tpu_custom_call.1} parent=5 // pred_check_branch
        %178 = sbr.rel (%p176) target = $region28
      $region27: #{tpu_custom_call.1} parent=5 // pred_region
        // Predicated region
        $region29: #{tpu_custom_call.1} parent=27 // pred_check
          %p179 = pneg %p67
        $region30: #{tpu_custom_call.1} parent=27 // pred_check_branch
          %181 = sbr.rel (%p179) target = $region32
        $region31: #{tpu_custom_call.1} parent=27 // pred_region
          %p182 = scmp.lt.s32.totalorder %s21, 1
          %s183 = scalar_select %p182, %s21, 1
          %s184 = smul.addr %s183, 54
          %s185 = smul.addr %s184, 8
          %s186 = scalar_lea.vmem %s1, %s185
        $region32: #{tpu_custom_call.1} parent=27 // pred_fallthru
          _
      $region28: #{tpu_custom_call.1} parent=5 // pred_fallthru
        _
      %p187 = scmp.le.s32.totalorder 1, %s14
      %p188 = scmp.lt.s32.totalorder %s14, 3
      %p189 = pnand %p187, %p188
      %p190 = pneg %p189
      // Predicated region
      $region33: #{tpu_custom_call.1} parent=5 // pred_check
        _
      $region34: #{tpu_custom_call.1} parent=5 // pred_check_branch
        %192 = sbr.rel (%p189) target = $region36
      $region35: #{tpu_custom_call.1} parent=5 // pred_region
        %s193 = ssub.s32 %s14, 1
        // Predicated region
        $region37: #{tpu_custom_call.1} parent=35 // pred_check
          %p194 = pneg %p47
        $region38: #{tpu_custom_call.1} parent=35 // pred_check_branch
          %196 = sbr.rel (%p194) target = $region40
        $region39: #{tpu_custom_call.1} parent=35 // pred_region
          %197 = dma.done [#allocation4], 16
        $region40: #{tpu_custom_call.1} parent=35 // pred_fallthru
          _
        %198 = sfence
        %p199 = pneg %p47
        %p200 = pneg %p44
        %p201 = scmp.lt.s32.totalorder %s23, 1
        %s202 = scalar_select %p201, %s23, 1
        %s203 = smul.addr %s202, 54
        %s204 = smul.addr %s203, 8
        %s205 = scalar_lea.vmem %s1, %s204
        %p206 = pneg %p73
        %p207 = pneg %p70
        %p208 = pneg %p94
        %p209 = pneg %p91
        %p210 = pneg %p115
        %p211 = pneg %p112
        %p212 = pneg %p143
        %p213 = pneg %p140
        %s214 = sand.u32 %s130, 1
        %s215 = scalar_lea.sflag [#allocation3], %s214
        %s216 = sand.u32 %s130, 1
        %s217 = smul.addr %s216, 256
        %s218 = scalar_lea.vmem [#allocation5], %s217
        %p219 = scmp.lt.s32.totalorder %s23, 1
        %s220 = scalar_select %p219, %s23, 1
        %s221 = smul.addr %s220, 54
        %s222 = smul.addr %s221, 8
        %s223 = scalar_lea.vmem %s1, %s222
        %s224 = smul.u32 16, %s24
        %s226 = sld [smem:[#allocation2]]
        %s227 = sld [smem:[#allocation2 + $0x1]]
        %s228 = sld [smem:[#allocation2 + $0x2]]
        %s229 = smul.u32 %s24, 16
        %s230 = smul.u32 %s229, 24
        %s231 = scalar_lea.vmem %s223, %s230
        %v232 = vld [vmem:[%s231] sm:$0xff]
        %v233 = vld [vmem:[%s231 + $0x8] sm:$0xff]
        %v234 = vld [vmem:[%s231 + $0x10] sm:$0x3]
        %v235 = vld [vmem:[%s231 + $0x18] sm:$0xff]
        %v236 = vld [vmem:[%s231 + $0x20] sm:$0xff]
        %v237 = vld [vmem:[%s231 + $0x28] sm:$0x3]
        %v238 = vld [vmem:[%s231 + $0x30] sm:$0xff]
        %v239 = vld [vmem:[%s231 + $0x38] sm:$0xff]
        %v240 = vld [vmem:[%s231 + $0x40] sm:$0x3]
        %v241 = vld [vmem:[%s231 + $0x48] sm:$0xff]
        %v242 = vld [vmem:[%s231 + $0x50] sm:$0xff]
        %v243 = vld [vmem:[%s231 + $0x58] sm:$0x3]
        %v244 = vld [vmem:[%s231 + $0x60] sm:$0xff]
        %v245 = vld [vmem:[%s231 + $0x68] sm:$0xff]
        %v246 = vld [vmem:[%s231 + $0x70] sm:$0x3]
        %v247 = vld [vmem:[%s231 + $0x78] sm:$0xff]
        %v248 = vld [vmem:[%s231 + $0x80] sm:$0xff]
        %v249 = vld [vmem:[%s231 + $0x88] sm:$0x3]
        %v250 = vld [vmem:[%s231 + $0x90] sm:$0xff]
        %v251 = vld [vmem:[%s231 + $0x98] sm:$0xff]
        %v252 = vld [vmem:[%s231 + $0xa0] sm:$0x3]
        %v253 = vld [vmem:[%s231 + $0xa8] sm:$0xff]
        %v254 = vld [vmem:[%s231 + $0xb0] sm:$0xff]
        %v255 = vld [vmem:[%s231 + $0xb8] sm:$0x3]
        %v256 = vld [vmem:[%s231 + $0xc0] sm:$0xff]
        %v257 = vld [vmem:[%s231 + $0xc8] sm:$0xff]
        %v258 = vld [vmem:[%s231 + $0xd0] sm:$0x3]
        %v259 = vld [vmem:[%s231 + $0xd8] sm:$0xff]
        %v260 = vld [vmem:[%s231 + $0xe0] sm:$0xff]
        %v261 = vld [vmem:[%s231 + $0xe8] sm:$0x3]
        %v262 = vld [vmem:[%s231 + $0xf0] sm:$0xff]
        %v263 = vld [vmem:[%s231 + $0xf8] sm:$0xff]
        %v264 = vld [vmem:[%s231 + $0x100] sm:$0x3]
        %v265 = vld [vmem:[%s231 + $0x108] sm:$0xff]
        %v266 = vld [vmem:[%s231 + $0x110] sm:$0xff]
        %v267 = vld [vmem:[%s231 + $0x118] sm:$0x3]
        %v268 = vld [vmem:[%s231 + $0x120] sm:$0xff]
        %v269 = vld [vmem:[%s231 + $0x128] sm:$0xff]
        %v270 = vld [vmem:[%s231 + $0x130] sm:$0x3]
        %v271 = vld [vmem:[%s231 + $0x138] sm:$0xff]
        %v272 = vld [vmem:[%s231 + $0x140] sm:$0xff]
        %v273 = vld [vmem:[%s231 + $0x148] sm:$0x3]
        %v274 = vld [vmem:[%s231 + $0x150] sm:$0xff]
        %v275 = vld [vmem:[%s231 + $0x158] sm:$0xff]
        %v276 = vld [vmem:[%s231 + $0x160] sm:$0x3]
        %v277 = vld [vmem:[%s231 + $0x168] sm:$0xff]
        %v278 = vld [vmem:[%s231 + $0x170] sm:$0xff]
        %v279 = vld [vmem:[%s231 + $0x178] sm:$0x3]
        %v280 = vld [vmem:[%s231 + $0x180] sm:$0xff]
        %v281 = vld [vmem:[%s231 + $0x188] sm:$0xff]
        %v282 = vld [vmem:[%s231 + $0x190] sm:$0x3]
        %v283 = vld [vmem:[%s231 + $0x198] sm:$0xff]
        %v284 = vld [vmem:[%s231 + $0x1a0] sm:$0xff]
        %v285 = vld [vmem:[%s231 + $0x1a8] sm:$0x3]
        %v286 = vstv %s227
        %v287 = vmul.f32 %v232, %v286
        %v288 = vmul.f32 %v233, %v286
        %v289 = vmul.f32 %v234, %v286
        %v290 = vmul.f32 %v235, %v286
        %v291 = vmul.f32 %v236, %v286
        %v292 = vmul.f32 %v237, %v286
        %v293 = vmul.f32 %v238, %v286
        %v294 = vmul.f32 %v239, %v286
        %v295 = vmul.f32 %v240, %v286
        %v296 = vmul.f32 %v241, %v286
        %v297 = vmul.f32 %v242, %v286
        %v298 = vmul.f32 %v243, %v286
        %v299 = vmul.f32 %v244, %v286
        %v300 = vmul.f32 %v245, %v286
        %v301 = vmul.f32 %v246, %v286
        %v302 = vmul.f32 %v247, %v286
        %v303 = vmul.f32 %v248, %v286
        %v304 = vmul.f32 %v249, %v286
        %v305 = vmul.f32 %v250, %v286
        %v306 = vmul.f32 %v251, %v286
        %v307 = vmul.f32 %v252, %v286
        %v308 = vmul.f32 %v253, %v286
        %v309 = vmul.f32 %v254, %v286
        %v310 = vmul.f32 %v255, %v286
        %v311 = vmul.f32 %v256, %v286
        %v312 = vmul.f32 %v257, %v286
        %v313 = vmul.f32 %v258, %v286
        %v314 = vmul.f32 %v259, %v286
        %v315 = vmul.f32 %v260, %v286
        %v316 = vmul.f32 %v261, %v286
        %v317 = vmul.f32 %v262, %v286
        %v318 = vmul.f32 %v263, %v286
        %v319 = vmul.f32 %v264, %v286
        %v320 = vmul.f32 %v265, %v286
        %v321 = vmul.f32 %v266, %v286
        %v322 = vmul.f32 %v267, %v286
        %v323 = vmul.f32 %v268, %v286
        %v324 = vmul.f32 %v269, %v286
        %v325 = vmul.f32 %v270, %v286
        %v326 = vmul.f32 %v271, %v286
        %v327 = vmul.f32 %v272, %v286
        %v328 = vmul.f32 %v273, %v286
        %v329 = vmul.f32 %v274, %v286
        %v330 = vmul.f32 %v275, %v286
        %v331 = vmul.f32 %v276, %v286
        %v332 = vmul.f32 %v277, %v286
        %v333 = vmul.f32 %v278, %v286
        %v334 = vmul.f32 %v279, %v286
        %v335 = vmul.f32 %v280, %v286
        %v336 = vmul.f32 %v281, %v286
        %v337 = vmul.f32 %v282, %v286
        %v338 = vmul.f32 %v283, %v286
        %v339 = vmul.f32 %v284, %v286
        %v340 = vmul.f32 %v285, %v286
        %v341 = vstv %s228
        %v342 = vadd.f32 %v287, %v341
        %v343 = vadd.f32 %v288, %v341
        %v344 = vadd.f32 %v289, %v341
        %v345 = vadd.f32 %v290, %v341
        %v346 = vadd.f32 %v291, %v341
        %v347 = vadd.f32 %v292, %v341
        %v348 = vadd.f32 %v293, %v341
        %v349 = vadd.f32 %v294, %v341
        %v350 = vadd.f32 %v295, %v341
        %v351 = vadd.f32 %v296, %v341
        %v352 = vadd.f32 %v297, %v341
        %v353 = vadd.f32 %v298, %v341
        %v354 = vadd.f32 %v299, %v341
        %v355 = vadd.f32 %v300, %v341
        %v356 = vadd.f32 %v301, %v341
        %v357 = vadd.f32 %v302, %v341
        %v358 = vadd.f32 %v303, %v341
        %v359 = vadd.f32 %v304, %v341
        %v360 = vadd.f32 %v305, %v341
        %v361 = vadd.f32 %v306, %v341
        %v362 = vadd.f32 %v307, %v341
        %v363 = vadd.f32 %v308, %v341
        %v364 = vadd.f32 %v309, %v341
        %v365 = vadd.f32 %v310, %v341
        %v366 = vadd.f32 %v311, %v341
        %v367 = vadd.f32 %v312, %v341
        %v368 = vadd.f32 %v313, %v341
        %v369 = vadd.f32 %v314, %v341
        %v370 = vadd.f32 %v315, %v341
        %v371 = vadd.f32 %v316, %v341
        %v372 = vadd.f32 %v317, %v341
        %v373 = vadd.f32 %v318, %v341
        %v374 = vadd.f32 %v319, %v341
        %v375 = vadd.f32 %v320, %v341
        %v376 = vadd.f32 %v321, %v341
        %v377 = vadd.f32 %v322, %v341
        %v378 = vadd.f32 %v323, %v341
        %v379 = vadd.f32 %v324, %v341
        %v380 = vadd.f32 %v325, %v341
        %v381 = vadd.f32 %v326, %v341
        %v382 = vadd.f32 %v327, %v341
        %v383 = vadd.f32 %v328, %v341
        %v384 = vadd.f32 %v329, %v341
        %v385 = vadd.f32 %v330, %v341
        %v386 = vadd.f32 %v331, %v341
        %v387 = vadd.f32 %v332, %v341
        %v388 = vadd.f32 %v333, %v341
        %v389 = vadd.f32 %v334, %v341
        %v390 = vadd.f32 %v335, %v341
        %v391 = vadd.f32 %v336, %v341
        %v392 = vadd.f32 %v337, %v341
        %v393 = vadd.f32 %v338, %v341
        %v394 = vadd.f32 %v339, %v341
        %v395 = vadd.f32 %v340, %v341
        %v396 = vround.ne.pseudo %v342
        %v397 = vround.ne.pseudo %v343
        %v398 = vround.ne.pseudo %v344
        %v399 = vround.ne.pseudo %v345
        %v400 = vround.ne.pseudo %v346
        %v401 = vround.ne.pseudo %v347
        %v402 = vround.ne.pseudo %v348
        %v403 = vround.ne.pseudo %v349
        %v404 = vround.ne.pseudo %v350
        %v405 = vround.ne.pseudo %v351
        %v406 = vround.ne.pseudo %v352
        %v407 = vround.ne.pseudo %v353
        %v408 = vround.ne.pseudo %v354
        %v409 = vround.ne.pseudo %v355
        %v410 = vround.ne.pseudo %v356
        %v411 = vround.ne.pseudo %v357
        %v412 = vround.ne.pseudo %v358
        %v413 = vround.ne.pseudo %v359
        %v414 = vround.ne.pseudo %v360
        %v415 = vround.ne.pseudo %v361
        %v416 = vround.ne.pseudo %v362
        %v417 = vround.ne.pseudo %v363
        %v418 = vround.ne.pseudo %v364
        %v419 = vround.ne.pseudo %v365
        %v420 = vround.ne.pseudo %v366
        %v421 = vround.ne.pseudo %v367
        %v422 = vround.ne.pseudo %v368
        %v423 = vround.ne.pseudo %v369
        %v424 = vround.ne.pseudo %v370
        %v425 = vround.ne.pseudo %v371
        %v426 = vround.ne.pseudo %v372
        %v427 = vround.ne.pseudo %v373
        %v428 = vround.ne.pseudo %v374
        %v429 = vround.ne.pseudo %v375
        %v430 = vround.ne.pseudo %v376
        %v431 = vround.ne.pseudo %v377
        %v432 = vround.ne.pseudo %v378
        %v433 = vround.ne.pseudo %v379
        %v434 = vround.ne.pseudo %v380
        %v435 = vround.ne.pseudo %v381
        %v436 = vround.ne.pseudo %v382
        %v437 = vround.ne.pseudo %v383
        %v438 = vround.ne.pseudo %v384
        %v439 = vround.ne.pseudo %v385
        %v440 = vround.ne.pseudo %v386
        %v441 = vround.ne.pseudo %v387
        %v442 = vround.ne.pseudo %v388
        %v443 = vround.ne.pseudo %v389
        %v444 = vround.ne.pseudo %v390
        %v445 = vround.ne.pseudo %v391
        %v446 = vround.ne.pseudo %v392
        %v447 = vround.ne.pseudo %v393
        %v448 = vround.ne.pseudo %v394
        %v449 = vround.ne.pseudo %v395
        %v450 = vmax.f32 %v396, 0.0
        %v451 = vmax.f32 %v397, 0.0
        %v452 = vmax.f32 %v398, 0.0
        %v453 = vmax.f32 %v399, 0.0
        %v454 = vmax.f32 %v400, 0.0
        %v455 = vmax.f32 %v401, 0.0
        %v456 = vmax.f32 %v402, 0.0
        %v457 = vmax.f32 %v403, 0.0
        %v458 = vmax.f32 %v404, 0.0
        %v459 = vmax.f32 %v405, 0.0
        %v460 = vmax.f32 %v406, 0.0
        %v461 = vmax.f32 %v407, 0.0
        %v462 = vmax.f32 %v408, 0.0
        %v463 = vmax.f32 %v409, 0.0
        %v464 = vmax.f32 %v410, 0.0
        %v465 = vmax.f32 %v411, 0.0
        %v466 = vmax.f32 %v412, 0.0
        %v467 = vmax.f32 %v413, 0.0
        %v468 = vmax.f32 %v414, 0.0
        %v469 = vmax.f32 %v415, 0.0
        %v470 = vmax.f32 %v416, 0.0
        %v471 = vmax.f32 %v417, 0.0
        %v472 = vmax.f32 %v418, 0.0
        %v473 = vmax.f32 %v419, 0.0
        %v474 = vmax.f32 %v420, 0.0
        %v475 = vmax.f32 %v421, 0.0
        %v476 = vmax.f32 %v422, 0.0
        %v477 = vmax.f32 %v423, 0.0
        %v478 = vmax.f32 %v424, 0.0
        %v479 = vmax.f32 %v425, 0.0
        %v480 = vmax.f32 %v426, 0.0
        %v481 = vmax.f32 %v427, 0.0
        %v482 = vmax.f32 %v428, 0.0
        %v483 = vmax.f32 %v429, 0.0
        %v484 = vmax.f32 %v430, 0.0
        %v485 = vmax.f32 %v431, 0.0
        %v486 = vmax.f32 %v432, 0.0
        %v487 = vmax.f32 %v433, 0.0
        %v488 = vmax.f32 %v434, 0.0
        %v489 = vmax.f32 %v435, 0.0
        %v490 = vmax.f32 %v436, 0.0
        %v491 = vmax.f32 %v437, 0.0
        %v492 = vmax.f32 %v438, 0.0
        %v493 = vmax.f32 %v439, 0.0
        %v494 = vmax.f32 %v440, 0.0
        %v495 = vmax.f32 %v441, 0.0
        %v496 = vmax.f32 %v442, 0.0
        %v497 = vmax.f32 %v443, 0.0
        %v498 = vmax.f32 %v444, 0.0
        %v499 = vmax.f32 %v445, 0.0
        %v500 = vmax.f32 %v446, 0.0
        %v501 = vmax.f32 %v447, 0.0
        %v502 = vmax.f32 %v448, 0.0
        %v503 = vmax.f32 %v449, 0.0
        %v504 = vmin.f32 %v450, 255.0
        %v505 = vmin.f32 %v451, 255.0
        %v506 = vmin.f32 %v452, 255.0
        %v507 = vmin.f32 %v453, 255.0
        %v508 = vmin.f32 %v454, 255.0
        %v509 = vmin.f32 %v455, 255.0
        %v510 = vmin.f32 %v456, 255.0
        %v511 = vmin.f32 %v457, 255.0
        %v512 = vmin.f32 %v458, 255.0
        %v513 = vmin.f32 %v459, 255.0
        %v514 = vmin.f32 %v460, 255.0
        %v515 = vmin.f32 %v461, 255.0
        %v516 = vmin.f32 %v462, 255.0
        %v517 = vmin.f32 %v463, 255.0
        %v518 = vmin.f32 %v464, 255.0
        %v519 = vmin.f32 %v465, 255.0
        %v520 = vmin.f32 %v466, 255.0
        %v521 = vmin.f32 %v467, 255.0
        %v522 = vmin.f32 %v468, 255.0
        %v523 = vmin.f32 %v469, 255.0
        %v524 = vmin.f32 %v470, 255.0
        %v525 = vmin.f32 %v471, 255.0
        %v526 = vmin.f32 %v472, 255.0
        %v527 = vmin.f32 %v473, 255.0
        %v528 = vmin.f32 %v474, 255.0
        %v529 = vmin.f32 %v475, 255.0
        %v530 = vmin.f32 %v476, 255.0
        %v531 = vmin.f32 %v477, 255.0
        %v532 = vmin.f32 %v478, 255.0
        %v533 = vmin.f32 %v479, 255.0
        %v534 = vmin.f32 %v480, 255.0
        %v535 = vmin.f32 %v481, 255.0
        %v536 = vmin.f32 %v482, 255.0
        %v537 = vmin.f32 %v483, 255.0
        %v538 = vmin.f32 %v484, 255.0
        %v539 = vmin.f32 %v485, 255.0
        %v540 = vmin.f32 %v486, 255.0
        %v541 = vmin.f32 %v487, 255.0
        %v542 = vmin.f32 %v488, 255.0
        %v543 = vmin.f32 %v489, 255.0
        %v544 = vmin.f32 %v490, 255.0
        %v545 = vmin.f32 %v491, 255.0
        %v546 = vmin.f32 %v492, 255.0
        %v547 = vmin.f32 %v493, 255.0
        %v548 = vmin.f32 %v494, 255.0
        %v549 = vmin.f32 %v495, 255.0
        %v550 = vmin.f32 %v496, 255.0
        %v551 = vmin.f32 %v497, 255.0
        %v552 = vmin.f32 %v498, 255.0
        %v553 = vmin.f32 %v499, 255.0
        %v554 = vmin.f32 %v500, 255.0
        %v555 = vmin.f32 %v501, 255.0
        %v556 = vmin.f32 %v502, 255.0
        %v557 = vmin.f32 %v503, 255.0
        %v558 = vsub.f32 %v504, %v341
        %v559 = vsub.f32 %v505, %v341
        %v560 = vsub.f32 %v506, %v341
        %v561 = vsub.f32 %v507, %v341
        %v562 = vsub.f32 %v508, %v341
        %v563 = vsub.f32 %v509, %v341
        %v564 = vsub.f32 %v510, %v341
        %v565 = vsub.f32 %v511, %v341
        %v566 = vsub.f32 %v512, %v341
        %v567 = vsub.f32 %v513, %v341
        %v568 = vsub.f32 %v514, %v341
        %v569 = vsub.f32 %v515, %v341
        %v570 = vsub.f32 %v516, %v341
        %v571 = vsub.f32 %v517, %v341
        %v572 = vsub.f32 %v518, %v341
        %v573 = vsub.f32 %v519, %v341
        %v574 = vsub.f32 %v520, %v341
        %v575 = vsub.f32 %v521, %v341
        %v576 = vsub.f32 %v522, %v341
        %v577 = vsub.f32 %v523, %v341
        %v578 = vsub.f32 %v524, %v341
        %v579 = vsub.f32 %v525, %v341
        %v580 = vsub.f32 %v526, %v341
        %v581 = vsub.f32 %v527, %v341
        %v582 = vsub.f32 %v528, %v341
        %v583 = vsub.f32 %v529, %v341
        %v584 = vsub.f32 %v530, %v341
        %v585 = vsub.f32 %v531, %v341
        %v586 = vsub.f32 %v532, %v341
        %v587 = vsub.f32 %v533, %v341
        %v588 = vsub.f32 %v534, %v341
        %v589 = vsub.f32 %v535, %v341
        %v590 = vsub.f32 %v536, %v341
        %v591 = vsub.f32 %v537, %v341
        %v592 = vsub.f32 %v538, %v341
        %v593 = vsub.f32 %v539, %v341
        %v594 = vsub.f32 %v540, %v341
        %v595 = vsub.f32 %v541, %v341
        %v596 = vsub.f32 %v542, %v341
        %v597 = vsub.f32 %v543, %v341
        %v598 = vsub.f32 %v544, %v341
        %v599 = vsub.f32 %v545, %v341
        %v600 = vsub.f32 %v546, %v341
        %v601 = vsub.f32 %v547, %v341
        %v602 = vsub.f32 %v548, %v341
        %v603 = vsub.f32 %v549, %v341
        %v604 = vsub.f32 %v550, %v341
        %v605 = vsub.f32 %v551, %v341
        %v606 = vsub.f32 %v552, %v341
        %v607 = vsub.f32 %v553, %v341
        %v608 = vsub.f32 %v554, %v341
        %v609 = vsub.f32 %v555, %v341
        %v610 = vsub.f32 %v556, %v341
        %v611 = vsub.f32 %v557, %v341
        %v612 = vpack.c.bf16 %v559, %v558
        %v613 = vpack.c.bf16 %v560, %v560
        %v614 = vpack.c.bf16 %v562, %v561
        %v615 = vpack.c.bf16 %v563, %v563
        %v616 = vpack.c.bf16 %v565, %v564
        %v617 = vpack.c.bf16 %v566, %v566
        %v618 = vpack.c.bf16 %v568, %v567
        %v619 = vpack.c.bf16 %v569, %v569
        %v620 = vpack.c.bf16 %v571, %v570
        %v621 = vpack.c.bf16 %v572, %v572
        %v622 = vpack.c.bf16 %v574, %v573
        %v623 = vpack.c.bf16 %v575, %v575
        %v624 = vpack.c.bf16 %v577, %v576
        %v625 = vpack.c.bf16 %v578, %v578
        %v626 = vpack.c.bf16 %v580, %v579
        %v627 = vpack.c.bf16 %v581, %v581
        %v628 = vpack.c.bf16 %v583, %v582
        %v629 = vpack.c.bf16 %v584, %v584
        %v630 = vpack.c.bf16 %v586, %v585
        %v631 = vpack.c.bf16 %v587, %v587
        %v632 = vpack.c.bf16 %v589, %v588
        %v633 = vpack.c.bf16 %v590, %v590
        %v634 = vpack.c.bf16 %v592, %v591
        %v635 = vpack.c.bf16 %v593, %v593
        %v636 = vpack.c.bf16 %v595, %v594
        %v637 = vpack.c.bf16 %v596, %v596
        %v638 = vpack.c.bf16 %v598, %v597
        %v639 = vpack.c.bf16 %v599, %v599
        %v640 = vpack.c.bf16 %v601, %v600
        %v641 = vpack.c.bf16 %v602, %v602
        %v642 = vpack.c.bf16 %v604, %v603
        %v643 = vpack.c.bf16 %v605, %v605
        %v644 = vpack.c.bf16 %v607, %v606
        %v645 = vpack.c.bf16 %v608, %v608
        %v646 = vpack.c.bf16 %v610, %v609
        %v647 = vpack.c.bf16 %v611, %v611
        %vm648 = vsmask.f32 7424
        %v650 = vshrl.u32 %v612, 16
        %v652 = vshll.u32 %v612, 16
        %v654 = vrot.slane %v652, 1
        %v655 = vor.u32 %v650, %v654
        %v657 = vshll.u32 %v613, 16
        %v659 = vrot.slane %v657, 1
        %v660 = vsel %vm648, %v655, %v659
        %v662 = vshrl.u32 %v614, 16
        %v664 = vshll.u32 %v614, 16
        %v666 = vrot.slane %v664, 1
        %v667 = vor.u32 %v662, %v666
        %v669 = vshll.u32 %v615, 16
        %v671 = vrot.slane %v669, 1
        %v672 = vsel %vm648, %v667, %v671
        %v674 = vshrl.u32 %v616, 16
        %v676 = vshll.u32 %v616, 16
        %v678 = vrot.slane %v676, 1
        %v679 = vor.u32 %v674, %v678
        %v681 = vshll.u32 %v617, 16
        %v683 = vrot.slane %v681, 1
        %v684 = vsel %vm648, %v679, %v683
        %v686 = vshrl.u32 %v618, 16
        %v688 = vshll.u32 %v618, 16
        %v690 = vrot.slane %v688, 1
        %v691 = vor.u32 %v686, %v690
        %v693 = vshll.u32 %v619, 16
        %v695 = vrot.slane %v693, 1
        %v696 = vsel %vm648, %v691, %v695
        %v698 = vshrl.u32 %v620, 16
        %v700 = vshll.u32 %v620, 16
        %v702 = vrot.slane %v700, 1
        %v703 = vor.u32 %v698, %v702
        %v705 = vshll.u32 %v621, 16
        %v707 = vrot.slane %v705, 1
        %v708 = vsel %vm648, %v703, %v707
        %v710 = vshrl.u32 %v622, 16
        %v712 = vshll.u32 %v622, 16
        %v714 = vrot.slane %v712, 1
        %v715 = vor.u32 %v710, %v714
        %v717 = vshll.u32 %v623, 16
        %v719 = vrot.slane %v717, 1
        %v720 = vsel %vm648, %v715, %v719
        %v722 = vshrl.u32 %v624, 16
        %v724 = vshll.u32 %v624, 16
        %v726 = vrot.slane %v724, 1
        %v727 = vor.u32 %v722, %v726
        %v729 = vshll.u32 %v625, 16
        %v731 = vrot.slane %v729, 1
        %v732 = vsel %vm648, %v727, %v731
        %v734 = vshrl.u32 %v626, 16
        %v736 = vshll.u32 %v626, 16
        %v738 = vrot.slane %v736, 1
        %v739 = vor.u32 %v734, %v738
        %v741 = vshll.u32 %v627, 16
        %v743 = vrot.slane %v741, 1
        %v744 = vsel %vm648, %v739, %v743
        %v746 = vshrl.u32 %v628, 16
        %v748 = vshll.u32 %v628, 16
        %v750 = vrot.slane %v748, 1
        %v751 = vor.u32 %v746, %v750
        %v753 = vshll.u32 %v629, 16
        %v755 = vrot.slane %v753, 1
        %v756 = vsel %vm648, %v751, %v755
        %v758 = vshrl.u32 %v630, 16
        %v760 = vshll.u32 %v630, 16
        %v762 = vrot.slane %v760, 1
        %v763 = vor.u32 %v758, %v762
        %v765 = vshll.u32 %v631, 16
        %v767 = vrot.slane %v765, 1
        %v768 = vsel %vm648, %v763, %v767
        %v770 = vshrl.u32 %v632, 16
        %v772 = vshll.u32 %v632, 16
        %v774 = vrot.slane %v772, 1
        %v775 = vor.u32 %v770, %v774
        %v777 = vshll.u32 %v633, 16
        %v779 = vrot.slane %v777, 1
        %v780 = vsel %vm648, %v775, %v779
        %v782 = vshrl.u32 %v634, 16
        %v784 = vshll.u32 %v634, 16
        %v786 = vrot.slane %v784, 1
        %v787 = vor.u32 %v782, %v786
        %v789 = vshll.u32 %v635, 16
        %v791 = vrot.slane %v789, 1
        %v792 = vsel %vm648, %v787, %v791
        %v794 = vshrl.u32 %v636, 16
        %v796 = vshll.u32 %v636, 16
        %v798 = vrot.slane %v796, 1
        %v799 = vor.u32 %v794, %v798
        %v801 = vshll.u32 %v637, 16
        %v803 = vrot.slane %v801, 1
        %v804 = vsel %vm648, %v799, %v803
        %v806 = vshrl.u32 %v638, 16
        %v808 = vshll.u32 %v638, 16
        %v810 = vrot.slane %v808, 1
        %v811 = vor.u32 %v806, %v810
        %v813 = vshll.u32 %v639, 16
        %v815 = vrot.slane %v813, 1
        %v816 = vsel %vm648, %v811, %v815
        %v818 = vshrl.u32 %v640, 16
        %v820 = vshll.u32 %v640, 16
        %v822 = vrot.slane %v820, 1
        %v823 = vor.u32 %v818, %v822
        %v825 = vshll.u32 %v641, 16
        %v827 = vrot.slane %v825, 1
        %v828 = vsel %vm648, %v823, %v827
        %v830 = vshrl.u32 %v642, 16
        %v832 = vshll.u32 %v642, 16
        %v834 = vrot.slane %v832, 1
        %v835 = vor.u32 %v830, %v834
        %v837 = vshll.u32 %v643, 16
        %v839 = vrot.slane %v837, 1
        %v840 = vsel %vm648, %v835, %v839
        %841 = vrot.lane.b32.xlu0 %v660, 4
        %v842 = vpop.permute.xlu0 %841
        %843 = vrot.lane.b32.xlu0 %v672, 4
        %v844 = vpop.permute.xlu0 %843
        %845 = vrot.lane.b32.xlu0 %v684, 4
        %v846 = vpop.permute.xlu0 %845
        %847 = vrot.lane.b32.xlu0 %v696, 4
        %v848 = vpop.permute.xlu0 %847
        %849 = vrot.lane.b32.xlu0 %v708, 4
        %v850 = vpop.permute.xlu0 %849
        %851 = vrot.lane.b32.xlu0 %v720, 4
        %v852 = vpop.permute.xlu0 %851
        %853 = vrot.lane.b32.xlu0 %v732, 4
        %v854 = vpop.permute.xlu0 %853
        %855 = vrot.lane.b32.xlu0 %v744, 4
        %v856 = vpop.permute.xlu0 %855
        %857 = vrot.lane.b32.xlu0 %v756, 4
        %v858 = vpop.permute.xlu0 %857
        %859 = vrot.lane.b32.xlu0 %v768, 4
        %v860 = vpop.permute.xlu0 %859
        %861 = vrot.lane.b32.xlu0 %v780, 4
        %v862 = vpop.permute.xlu0 %861
        %863 = vrot.lane.b32.xlu0 %v792, 4
        %v864 = vpop.permute.xlu0 %863
        %865 = vrot.lane.b32.xlu0 %v804, 4
        %v866 = vpop.permute.xlu0 %865
        %867 = vrot.lane.b32.xlu0 %v816, 4
        %v868 = vpop.permute.xlu0 %867
        %869 = vrot.lane.b32.xlu0 %v828, 4
        %v870 = vpop.permute.xlu0 %869
        %871 = vrot.lane.b32.xlu0 %v840, 4
        %v872 = vpop.permute.xlu0 %871
        %vm905 = vcmask 1046528
        %v906 = vrot.slane %v612, 1
        %v907 = vrot.slane %v613, 1
        %v908 = vsel %vm905, %v906, %v907
        %v909 = vrot.slane %v614, 1
        %v910 = vrot.slane %v615, 1
        %v911 = vsel %vm905, %v909, %v910
        %v912 = vrot.slane %v616, 1
        %v913 = vrot.slane %v617, 1
        %v914 = vsel %vm905, %v912, %v913
        %v915 = vrot.slane %v618, 1
        %v916 = vrot.slane %v619, 1
        %v917 = vsel %vm905, %v915, %v916
        %v918 = vrot.slane %v620, 1
        %v919 = vrot.slane %v621, 1
        %v920 = vsel %vm905, %v918, %v919
        %v921 = vrot.slane %v622, 1
        %v922 = vrot.slane %v623, 1
        %v923 = vsel %vm905, %v921, %v922
        %v924 = vrot.slane %v624, 1
        %v925 = vrot.slane %v625, 1
        %v926 = vsel %vm905, %v924, %v925
        %v927 = vrot.slane %v626, 1
        %v928 = vrot.slane %v627, 1
        %v929 = vsel %vm905, %v927, %v928
        %v930 = vrot.slane %v628, 1
        %v931 = vrot.slane %v629, 1
        %v932 = vsel %vm905, %v930, %v931
        %v933 = vrot.slane %v630, 1
        %v934 = vrot.slane %v631, 1
        %v935 = vsel %vm905, %v933, %v934
        %v936 = vrot.slane %v632, 1
        %v937 = vrot.slane %v633, 1
        %v938 = vsel %vm905, %v936, %v937
        %v939 = vrot.slane %v634, 1
        %v940 = vrot.slane %v635, 1
        %v941 = vsel %vm905, %v939, %v940
        %v942 = vrot.slane %v636, 1
        %v943 = vrot.slane %v637, 1
        %v944 = vsel %vm905, %v942, %v943
        %v945 = vrot.slane %v638, 1
        %v946 = vrot.slane %v639, 1
        %v947 = vsel %vm905, %v945, %v946
        %v948 = vrot.slane %v640, 1
        %v949 = vrot.slane %v641, 1
        %v950 = vsel %vm905, %v948, %v949
        %v951 = vrot.slane %v642, 1
        %v952 = vrot.slane %v643, 1
        %v953 = vsel %vm905, %v951, %v952
        %954 = vrot.lane.b32.xlu0 %v908, 8
        %v955 = vpop.permute.xlu0 %954
        %956 = vrot.lane.b32.xlu0 %v911, 8
        %v957 = vpop.permute.xlu0 %956
        %958 = vrot.lane.b32.xlu0 %v914, 8
        %v959 = vpop.permute.xlu0 %958
        %960 = vrot.lane.b32.xlu0 %v917, 8
        %v961 = vpop.permute.xlu0 %960
        %962 = vrot.lane.b32.xlu0 %v920, 8
        %v963 = vpop.permute.xlu0 %962
        %964 = vrot.lane.b32.xlu0 %v923, 8
        %v965 = vpop.permute.xlu0 %964
        %966 = vrot.lane.b32.xlu0 %v926, 8
        %v967 = vpop.permute.xlu0 %966
        %968 = vrot.lane.b32.xlu0 %v929, 8
        %v969 = vpop.permute.xlu0 %968
        %970 = vrot.lane.b32.xlu0 %v932, 8
        %v971 = vpop.permute.xlu0 %970
        %972 = vrot.lane.b32.xlu0 %v935, 8
        %v973 = vpop.permute.xlu0 %972
        %974 = vrot.lane.b32.xlu0 %v938, 8
        %v975 = vpop.permute.xlu0 %974
        %976 = vrot.lane.b32.xlu0 %v941, 8
        %v977 = vpop.permute.xlu0 %976
        %978 = vrot.lane.b32.xlu0 %v944, 8
        %v979 = vpop.permute.xlu0 %978
        %980 = vrot.lane.b32.xlu0 %v947, 8
        %v981 = vpop.permute.xlu0 %980
        %982 = vrot.lane.b32.xlu0 %v950, 8
        %v983 = vpop.permute.xlu0 %982
        %984 = vrot.lane.b32.xlu0 %v953, 8
        %v985 = vpop.permute.xlu0 %984
        %987 = vrot.lane.b32.xlu0 %v614, 12
        %v988 = vpop.permute.xlu0 %987
        %989 = vrot.lane.b32.xlu0 %v616, 12
        %v990 = vpop.permute.xlu0 %989
        %991 = vrot.lane.b32.xlu0 %v618, 12
        %v992 = vpop.permute.xlu0 %991
        %993 = vrot.lane.b32.xlu0 %v620, 12
        %v994 = vpop.permute.xlu0 %993
        %995 = vrot.lane.b32.xlu0 %v622, 12
        %v996 = vpop.permute.xlu0 %995
        %997 = vrot.lane.b32.xlu0 %v624, 12
        %v998 = vpop.permute.xlu0 %997
        %999 = vrot.lane.b32.xlu0 %v626, 12
        %v1000 = vpop.permute.xlu0 %999
        %1001 = vrot.lane.b32.xlu0 %v628, 12
        %v1002 = vpop.permute.xlu0 %1001
        %1003 = vrot.lane.b32.xlu0 %v630, 12
        %v1004 = vpop.permute.xlu0 %1003
        %1005 = vrot.lane.b32.xlu0 %v632, 12
        %v1006 = vpop.permute.xlu0 %1005
        %1007 = vrot.lane.b32.xlu0 %v634, 12
        %v1008 = vpop.permute.xlu0 %1007
        %1009 = vrot.lane.b32.xlu0 %v636, 12
        %v1010 = vpop.permute.xlu0 %1009
        %1011 = vrot.lane.b32.xlu0 %v638, 12
        %v1012 = vpop.permute.xlu0 %1011
        %1013 = vrot.lane.b32.xlu0 %v640, 12
        %v1014 = vpop.permute.xlu0 %1013
        %1015 = vrot.lane.b32.xlu0 %v642, 12
        %v1016 = vpop.permute.xlu0 %1015
        %1017 = vrot.lane.b32.xlu0 %v644, 12
        %v1018 = vpop.permute.xlu0 %1017
        %v1020 = vshrl.u32 %v644, 16
        %v1022 = vshll.u32 %v644, 16
        %v1024 = vrot.slane %v1022, 1
        %v1025 = vor.u32 %v1020, %v1024
        %v1027 = vshll.u32 %v645, 16
        %v1029 = vrot.slane %v1027, 1
        %v1030 = vsel %vm648, %v1025, %v1029
        %1031 = vrot.lane.b32.xlu0 %v672, 16
        %v1032 = vpop.permute.xlu0 %1031
        %1033 = vrot.lane.b32.xlu0 %v684, 16
        %v1034 = vpop.permute.xlu0 %1033
        %1035 = vrot.lane.b32.xlu0 %v696, 16
        %v1036 = vpop.permute.xlu0 %1035
        %1037 = vrot.lane.b32.xlu0 %v708, 16
        %v1038 = vpop.permute.xlu0 %1037
        %1039 = vrot.lane.b32.xlu0 %v720, 16
        %v1040 = vpop.permute.xlu0 %1039
        %1041 = vrot.lane.b32.xlu0 %v732, 16
        %v1042 = vpop.permute.xlu0 %1041
        %1043 = vrot.lane.b32.xlu0 %v744, 16
        %v1044 = vpop.permute.xlu0 %1043
        %1045 = vrot.lane.b32.xlu0 %v756, 16
        %v1046 = vpop.permute.xlu0 %1045
        %1047 = vrot.lane.b32.xlu0 %v768, 16
        %v1048 = vpop.permute.xlu0 %1047
        %1049 = vrot.lane.b32.xlu0 %v780, 16
        %v1050 = vpop.permute.xlu0 %1049
        %1051 = vrot.lane.b32.xlu0 %v792, 16
        %v1052 = vpop.permute.xlu0 %1051
        %1053 = vrot.lane.b32.xlu0 %v804, 16
        %v1054 = vpop.permute.xlu0 %1053
        %1055 = vrot.lane.b32.xlu0 %v816, 16
        %v1056 = vpop.permute.xlu0 %1055
        %1057 = vrot.lane.b32.xlu0 %v828, 16
        %v1058 = vpop.permute.xlu0 %1057
        %1059 = vrot.lane.b32.xlu0 %v840, 16
        %v1060 = vpop.permute.xlu0 %1059
        %1061 = vrot.lane.b32.xlu0 %v1030, 16
        %v1062 = vpop.permute.xlu0 %1061
        %v1064 = vrot.slane %v644, 1
        %v1065 = vrot.slane %v645, 1
        %v1066 = vsel %vm905, %v1064, %v1065
        %1067 = vrot.lane.b32.xlu0 %v911, 20
        %v1068 = vpop.permute.xlu0 %1067
        %1069 = vrot.lane.b32.xlu0 %v914, 20
        %v1070 = vpop.permute.xlu0 %1069
        %1071 = vrot.lane.b32.xlu0 %v917, 20
        %v1072 = vpop.permute.xlu0 %1071
        %1073 = vrot.lane.b32.xlu0 %v920, 20
        %v1074 = vpop.permute.xlu0 %1073
        %1075 = vrot.lane.b32.xlu0 %v923, 20
        %v1076 = vpop.permute.xlu0 %1075
        %1077 = vrot.lane.b32.xlu0 %v926, 20
        %v1078 = vpop.permute.xlu0 %1077
        %1079 = vrot.lane.b32.xlu0 %v929, 20
        %v1080 = vpop.permute.xlu0 %1079
        %1081 = vrot.lane.b32.xlu0 %v932, 20
        %v1082 = vpop.permute.xlu0 %1081
        %1083 = vrot.lane.b32.xlu0 %v935, 20
        %v1084 = vpop.permute.xlu0 %1083
        %1085 = vrot.lane.b32.xlu0 %v938, 20
        %v1086 = vpop.permute.xlu0 %1085
        %1087 = vrot.lane.b32.xlu0 %v941, 20
        %v1088 = vpop.permute.xlu0 %1087
        %1089 = vrot.lane.b32.xlu0 %v944, 20
        %v1090 = vpop.permute.xlu0 %1089
        %1091 = vrot.lane.b32.xlu0 %v947, 20
        %v1092 = vpop.permute.xlu0 %1091
        %1093 = vrot.lane.b32.xlu0 %v950, 20
        %v1094 = vpop.permute.xlu0 %1093
        %1095 = vrot.lane.b32.xlu0 %v953, 20
        %v1096 = vpop.permute.xlu0 %1095
        %1097 = vrot.lane.b32.xlu0 %v1066, 20
        %v1098 = vpop.permute.xlu0 %1097
        %1100 = vrot.lane.b32.xlu0 %v616, 24
        %v1101 = vpop.permute.xlu0 %1100
        %1102 = vrot.lane.b32.xlu0 %v618, 24
        %v1103 = vpop.permute.xlu0 %1102
        %1104 = vrot.lane.b32.xlu0 %v620, 24
        %v1105 = vpop.permute.xlu0 %1104
        %1106 = vrot.lane.b32.xlu0 %v622, 24
        %v1107 = vpop.permute.xlu0 %1106
        %1108 = vrot.lane.b32.xlu0 %v624, 24
        %v1109 = vpop.permute.xlu0 %1108
        %1110 = vrot.lane.b32.xlu0 %v626, 24
        %v1111 = vpop.permute.xlu0 %1110
        %1112 = vrot.lane.b32.xlu0 %v628, 24
        %v1113 = vpop.permute.xlu0 %1112
        %1114 = vrot.lane.b32.xlu0 %v630, 24
        %v1115 = vpop.permute.xlu0 %1114
        %1116 = vrot.lane.b32.xlu0 %v632, 24
        %v1117 = vpop.permute.xlu0 %1116
        %1118 = vrot.lane.b32.xlu0 %v634, 24
        %v1119 = vpop.permute.xlu0 %1118
        %1120 = vrot.lane.b32.xlu0 %v636, 24
        %v1121 = vpop.permute.xlu0 %1120
        %1122 = vrot.lane.b32.xlu0 %v638, 24
        %v1123 = vpop.permute.xlu0 %1122
        %1124 = vrot.lane.b32.xlu0 %v640, 24
        %v1125 = vpop.permute.xlu0 %1124
        %1126 = vrot.lane.b32.xlu0 %v642, 24
        %v1127 = vpop.permute.xlu0 %1126
        %1128 = vrot.lane.b32.xlu0 %v644, 24
        %v1129 = vpop.permute.xlu0 %1128
        %1130 = vrot.lane.b32.xlu0 %v646, 24
        %v1131 = vpop.permute.xlu0 %1130
        %v1133 = vshrl.u32 %v646, 16
        %v1135 = vshll.u32 %v646, 16
        %v1137 = vrot.slane %v1135, 1
        %v1138 = vor.u32 %v1133, %v1137
        %v1140 = vshll.u32 %v647, 16
        %v1142 = vrot.slane %v1140, 1
        %v1143 = vsel %vm648, %v1138, %v1142
        %1144 = vrot.lane.b32.xlu0 %v684, 28
        %v1145 = vpop.permute.xlu0 %1144
        %1146 = vrot.lane.b32.xlu0 %v696, 28
        %v1147 = vpop.permute.xlu0 %1146
        %1148 = vrot.lane.b32.xlu0 %v708, 28
        %v1149 = vpop.permute.xlu0 %1148
        %1150 = vrot.lane.b32.xlu0 %v720, 28
        %v1151 = vpop.permute.xlu0 %1150
        %1152 = vrot.lane.b32.xlu0 %v732, 28
        %v1153 = vpop.permute.xlu0 %1152
        %1154 = vrot.lane.b32.xlu0 %v744, 28
        %v1155 = vpop.permute.xlu0 %1154
        %1156 = vrot.lane.b32.xlu0 %v756, 28
        %v1157 = vpop.permute.xlu0 %1156
        %1158 = vrot.lane.b32.xlu0 %v768, 28
        %v1159 = vpop.permute.xlu0 %1158
        %1160 = vrot.lane.b32.xlu0 %v780, 28
        %v1161 = vpop.permute.xlu0 %1160
        %1162 = vrot.lane.b32.xlu0 %v792, 28
        %v1163 = vpop.permute.xlu0 %1162
        %1164 = vrot.lane.b32.xlu0 %v804, 28
        %v1165 = vpop.permute.xlu0 %1164
        %1166 = vrot.lane.b32.xlu0 %v816, 28
        %v1167 = vpop.permute.xlu0 %1166
        %1168 = vrot.lane.b32.xlu0 %v828, 28
        %v1169 = vpop.permute.xlu0 %1168
        %1170 = vrot.lane.b32.xlu0 %v840, 28
        %v1171 = vpop.permute.xlu0 %1170
        %1172 = vrot.lane.b32.xlu0 %v1030, 28
        %v1173 = vpop.permute.xlu0 %1172
        %1174 = vrot.lane.b32.xlu0 %v1143, 28
        %v1175 = vpop.permute.xlu0 %1174
        %v1177 = vrot.slane %v646, 1
        %v1178 = vrot.slane %v647, 1
        %v1179 = vsel %vm905, %v1177, %v1178
        %1180 = vrot.lane.b32.xlu0 %v914, 32
        %v1181 = vpop.permute.xlu0 %1180
        %1182 = vrot.lane.b32.xlu0 %v917, 32
        %v1183 = vpop.permute.xlu0 %1182
        %1184 = vrot.lane.b32.xlu0 %v920, 32
        %v1185 = vpop.permute.xlu0 %1184
        %1186 = vrot.lane.b32.xlu0 %v923, 32
        %v1187 = vpop.permute.xlu0 %1186
        %1188 = vrot.lane.b32.xlu0 %v926, 32
        %v1189 = vpop.permute.xlu0 %1188
        %1190 = vrot.lane.b32.xlu0 %v929, 32
        %v1191 = vpop.permute.xlu0 %1190
        %1192 = vrot.lane.b32.xlu0 %v932, 32
        %v1193 = vpop.permute.xlu0 %1192
        %1194 = vrot.lane.b32.xlu0 %v935, 32
        %v1195 = vpop.permute.xlu0 %1194
        %1196 = vrot.lane.b32.xlu0 %v938, 32
        %v1197 = vpop.permute.xlu0 %1196
        %1198 = vrot.lane.b32.xlu0 %v941, 32
        %v1199 = vpop.permute.xlu0 %1198
        %1200 = vrot.lane.b32.xlu0 %v944, 32
        %v1201 = vpop.permute.xlu0 %1200
        %1202 = vrot.lane.b32.xlu0 %v947, 32
        %v1203 = vpop.permute.xlu0 %1202
        %1204 = vrot.lane.b32.xlu0 %v950, 32
        %v1205 = vpop.permute.xlu0 %1204
        %1206 = vrot.lane.b32.xlu0 %v953, 32
        %v1207 = vpop.permute.xlu0 %1206
        %1208 = vrot.lane.b32.xlu0 %v1066, 32
        %v1209 = vpop.permute.xlu0 %1208
        %1210 = vrot.lane.b32.xlu0 %v1179, 32
        %v1211 = vpop.permute.xlu0 %1210
        %vm1212 = vcmask 31744
        %v1214 = vsel %vm1212, %v612, %v842
        %v1216 = vsel %vm1212, %v614, %v844
        %v1218 = vsel %vm1212, %v616, %v846
        %v1220 = vsel %vm1212, %v618, %v848
        %v1222 = vsel %vm1212, %v620, %v850
        %v1224 = vsel %vm1212, %v622, %v852
        %v1226 = vsel %vm1212, %v624, %v854
        %v1228 = vsel %vm1212, %v626, %v856
        %v1230 = vsel %vm1212, %v628, %v858
        %v1232 = vsel %vm1212, %v630, %v860
        %v1234 = vsel %vm1212, %v632, %v862
        %v1236 = vsel %vm1212, %v634, %v864
        %v1238 = vsel %vm1212, %v636, %v866
        %v1240 = vsel %vm1212, %v638, %v868
        %v1242 = vsel %vm1212, %v640, %v870
        %v1244 = vsel %vm1212, %v642, %v872
        %vm1245 = vcmask 64512
        %v1247 = vsel %vm1245, %v1214, %v955
        %v1249 = vsel %vm1245, %v1216, %v957
        %v1251 = vsel %vm1245, %v1218, %v959
        %v1253 = vsel %vm1245, %v1220, %v961
        %v1255 = vsel %vm1245, %v1222, %v963
        %v1257 = vsel %vm1245, %v1224, %v965
        %v1259 = vsel %vm1245, %v1226, %v967
        %v1261 = vsel %vm1245, %v1228, %v969
        %v1263 = vsel %vm1245, %v1230, %v971
        %v1265 = vsel %vm1245, %v1232, %v973
        %v1267 = vsel %vm1245, %v1234, %v975
        %v1269 = vsel %vm1245, %v1236, %v977
        %v1271 = vsel %vm1245, %v1238, %v979
        %v1273 = vsel %vm1245, %v1240, %v981
        %v1275 = vsel %vm1245, %v1242, %v983
        %v1277 = vsel %vm1245, %v1244, %v985
        %vm1278 = vcmask 97280
        %v1280 = vsel %vm1278, %v1247, %v988
        %v1282 = vsel %vm1278, %v1249, %v990
        %v1284 = vsel %vm1278, %v1251, %v992
        %v1286 = vsel %vm1278, %v1253, %v994
        %v1288 = vsel %vm1278, %v1255, %v996
        %v1290 = vsel %vm1278, %v1257, %v998
        %v1292 = vsel %vm1278, %v1259, %v1000
        %v1294 = vsel %vm1278, %v1261, %v1002
        %v1296 = vsel %vm1278, %v1263, %v1004
        %v1298 = vsel %vm1278, %v1265, %v1006
        %v1300 = vsel %vm1278, %v1267, %v1008
        %v1302 = vsel %vm1278, %v1269, %v1010
        %v1304 = vsel %vm1278, %v1271, %v1012
        %v1306 = vsel %vm1278, %v1273, %v1014
        %v1308 = vsel %vm1278, %v1275, %v1016
        %v1310 = vsel %vm1278, %v1277, %v1018
        %vm1311 = vcmask 130048
        %v1313 = vsel %vm1311, %v1280, %v1032
        %v1315 = vsel %vm1311, %v1282, %v1034
        %v1317 = vsel %vm1311, %v1284, %v1036
        %v1319 = vsel %vm1311, %v1286, %v1038
        %v1321 = vsel %vm1311, %v1288, %v1040
        %v1323 = vsel %vm1311, %v1290, %v1042
        %v1325 = vsel %vm1311, %v1292, %v1044
        %v1327 = vsel %vm1311, %v1294, %v1046
        %v1329 = vsel %vm1311, %v1296, %v1048
        %v1331 = vsel %vm1311, %v1298, %v1050
        %v1333 = vsel %vm1311, %v1300, %v1052
        %v1335 = vsel %vm1311, %v1302, %v1054
        %v1337 = vsel %vm1311, %v1304, %v1056
        %v1339 = vsel %vm1311, %v1306, %v1058
        %v1341 = vsel %vm1311, %v1308, %v1060
        %v1343 = vsel %vm1311, %v1310, %v1062
        %vm1344 = vcmask 162816
        %v1346 = vsel %vm1344, %v1313, %v1068
        %v1348 = vsel %vm1344, %v1315, %v1070
        %v1350 = vsel %vm1344, %v1317, %v1072
        %v1352 = vsel %vm1344, %v1319, %v1074
        %v1354 = vsel %vm1344, %v1321, %v1076
        %v1356 = vsel %vm1344, %v1323, %v1078
        %v1358 = vsel %vm1344, %v1325, %v1080
        %v1360 = vsel %vm1344, %v1327, %v1082
        %v1362 = vsel %vm1344, %v1329, %v1084
        %v1364 = vsel %vm1344, %v1331, %v1086
        %v1366 = vsel %vm1344, %v1333, %v1088
        %v1368 = vsel %vm1344, %v1335, %v1090
        %v1370 = vsel %vm1344, %v1337, %v1092
        %v1372 = vsel %vm1344, %v1339, %v1094
        %v1374 = vsel %vm1344, %v1341, %v1096
        %v1376 = vsel %vm1344, %v1343, %v1098
        %vm1377 = vcmask 195584
        %v1379 = vsel %vm1377, %v1346, %v1101
        %v1381 = vsel %vm1377, %v1348, %v1103
        %v1383 = vsel %vm1377, %v1350, %v1105
        %v1385 = vsel %vm1377, %v1352, %v1107
        %v1387 = vsel %vm1377, %v1354, %v1109
        %v1389 = vsel %vm1377, %v1356, %v1111
        %v1391 = vsel %vm1377, %v1358, %v1113
        %v1393 = vsel %vm1377, %v1360, %v1115
        %v1395 = vsel %vm1377, %v1362, %v1117
        %v1397 = vsel %vm1377, %v1364, %v1119
        %v1399 = vsel %vm1377, %v1366, %v1121
        %v1401 = vsel %vm1377, %v1368, %v1123
        %v1403 = vsel %vm1377, %v1370, %v1125
        %v1405 = vsel %vm1377, %v1372, %v1127
        %v1407 = vsel %vm1377, %v1374, %v1129
        %v1409 = vsel %vm1377, %v1376, %v1131
        %vm1410 = vcmask 228352
        %v1412 = vsel %vm1410, %v1379, %v1145
        %v1414 = vsel %vm1410, %v1381, %v1147
        %v1416 = vsel %vm1410, %v1383, %v1149
        %v1418 = vsel %vm1410, %v1385, %v1151
        %v1420 = vsel %vm1410, %v1387, %v1153
        %v1422 = vsel %vm1410, %v1389, %v1155
        %v1424 = vsel %vm1410, %v1391, %v1157
        %v1426 = vsel %vm1410, %v1393, %v1159
        %v1428 = vsel %vm1410, %v1395, %v1161
        %v1430 = vsel %vm1410, %v1397, %v1163
        %v1432 = vsel %vm1410, %v1399, %v1165
        %v1434 = vsel %vm1410, %v1401, %v1167
        %v1436 = vsel %vm1410, %v1403, %v1169
        %v1438 = vsel %vm1410, %v1405, %v1171
        %v1440 = vsel %vm1410, %v1407, %v1173
        %v1442 = vsel %vm1410, %v1409, %v1175
        %vm1443 = vcmask 261120
        %v1445 = vsel %vm1443, %v1412, %v1181
        %v1447 = vsel %vm1443, %v1414, %v1183
        %v1449 = vsel %vm1443, %v1416, %v1185
        %v1451 = vsel %vm1443, %v1418, %v1187
        %v1453 = vsel %vm1443, %v1420, %v1189
        %v1455 = vsel %vm1443, %v1422, %v1191
        %v1457 = vsel %vm1443, %v1424, %v1193
        %v1459 = vsel %vm1443, %v1426, %v1195
        %v1461 = vsel %vm1443, %v1428, %v1197
        %v1463 = vsel %vm1443, %v1430, %v1199
        %v1465 = vsel %vm1443, %v1432, %v1201
        %v1467 = vsel %vm1443, %v1434, %v1203
        %v1469 = vsel %vm1443, %v1436, %v1205
        %v1471 = vsel %vm1443, %v1438, %v1207
        %v1473 = vsel %vm1443, %v1440, %v1209
        %v1475 = vsel %vm1443, %v1442, %v1211
        %v1476 = vld [vmem:[%s2] sm:$0xf]
        %v1477 = vld [vmem:[%s2 + $0x4] sm:$0xf]
        %v1478 = vld [vmem:[%s2 + $0x8] sm:$0xf]
        %v1479 = vld [vmem:[%s2 + $0xc] sm:$0xf]
        %v1480 = vld [vmem:[%s2 + $0x10] sm:$0x3]
        %v1486 = vunpack.c.l.b16 %v1476
        %v1487 = vunpack.c.l.b16 %v1477
        %v1488 = vunpack.c.l.b16 %v1478
        %v1489 = vunpack.c.l.b16 %v1479
        %v1490 = vunpack.c.l.b16 %v1480
        %v1491 = vpack.c.b16 %v1487, %v1486
        %v1492 = vpack.c.b16 %v1489, %v1488
        %v1493 = vpack.c.b16 %v1490, %v1490
        %vm1496 = vcmask 293888
        %v1497 = vsel %vm1496, %v1445, 0
        %v1499 = vsel %vm1496, %v1447, 0
        %v1501 = vsel %vm1496, %v1449, 0
        %v1503 = vsel %vm1496, %v1451, 0
        %v1505 = vsel %vm1496, %v1453, 0
        %v1507 = vsel %vm1496, %v1455, 0
        %v1509 = vsel %vm1496, %v1457, 0
        %v1511 = vsel %vm1496, %v1459, 0
        %v1513 = vsel %vm1496, %v1461, 0
        %v1515 = vsel %vm1496, %v1463, 0
        %v1517 = vsel %vm1496, %v1465, 0
        %v1519 = vsel %vm1496, %v1467, 0
        %v1521 = vsel %vm1496, %v1469, 0
        %v1523 = vsel %vm1496, %v1471, 0
        %v1525 = vsel %vm1496, %v1473, 0
        %v1527 = vsel %vm1496, %v1475, 0
        %vm1529 = vcmask 1041408
        %v1531 = vsel %vm1529, %v1493, 0
        %1533 = vmatprep.subr.bf16.mxu0 0
        %1534 = vmatpush1.bf16.msra.mxu0 %v1491
        %1535 = vmatprep.subr.bf16.mxu0 0
        %1536 = vmatpush1.bf16.msra.mxu0 %v1492
        %1537 = vmatprep.subr.bf16.mxu0 0
        %1538 = vmatpush1.bf16.msra.mxu0 %v1531
        %1539 = vmatprep.subr.bf16.mxu0 0
        %1540 = vmatpush1.bf16.msra.mxu0 0
        %1541 = vmatprep.subr.bf16.mxu0 0
        %1542 = vmatpush1.bf16.msra.mxu0 0
        %1543 = vmatprep.subr.bf16.mxu0 0
        %1544 = vmatpush1.bf16.msra.mxu0 0
        %1545 = vmatprep.subr.bf16.mxu0 0
        %1546 = vmatpush1.bf16.msra.mxu0 0
        %1547 = vmatprep.subr.bf16.mxu0 0
        %1548 = vmatpush1.bf16.msra.mxu0 0
        %1549 = vmatprep.subr.bf16.mxu0 0
        %1550 = vmatpush1.bf16.msra.mxu0 0
        %1551 = vmatprep.subr.bf16.mxu0 0
        %1552 = vmatpush1.bf16.msra.mxu0 0
        %1553 = vmatprep.subr.bf16.mxu0 0
        %1554 = vmatpush1.bf16.msra.mxu0 0
        %1555 = vmatprep.subr.bf16.mxu0 0
        %1556 = vmatpush1.bf16.msra.mxu0 0
        %1557 = vmatprep.subr.bf16.mxu0 0
        %1558 = vmatpush1.bf16.msra.mxu0 0
        %1559 = vmatprep.subr.bf16.mxu0 0
        %1560 = vmatpush1.bf16.msra.mxu0 0
        %1561 = vmatprep.subr.bf16.mxu0 0
        %1562 = vmatpush1.bf16.msra.mxu0 0
        %1563 = vmatprep.subr.bf16.mxu0 0
        %1564 = vmatpush1.bf16.msra.mxu0 0
        %1565 = vmatprep.mubr.bf16.mxu0 0
        %1566 = vmatmul.mubr.bf16.gmra.mrb[0].mxu0 %v1497
        %v1567 = vpop.f32.mrb[0].mxu0
        %v1568 = vadd.f32 0.0, %v1567
        %v1569 = vpop.f32.mrb[0].mxu0
        %v1570 = vpop.f32.mrb[0].mxu0
        %v1571 = vadd.f32 0.0, %v1570
        %v1572 = vpop.f32.mrb[0].mxu0
        %1573 = vmatprep.mubr.bf16.mxu0 0
        %1574 = vmatmul.mubr.bf16.gmra.mrb[0].mxu0 %v1499
        %v1575 = vpop.f32.mrb[0].mxu0
        %v1576 = vadd.f32 0.0, %v1575
        %v1577 = vpop.f32.mrb[0].mxu0
        %v1578 = vpop.f32.mrb[0].mxu0
        %v1579 = vadd.f32 0.0, %v1578
        %v1580 = vpop.f32.mrb[0].mxu0
        %1581 = vmatprep.mubr.bf16.mxu0 0
        %1582 = vmatmul.mubr.bf16.gmra.mrb[0].mxu0 %v1501
        %v1583 = vpop.f32.mrb[0].mxu0
        %v1584 = vadd.f32 0.0, %v1583
        %v1585 = vpop.f32.mrb[0].mxu0
        %v1586 = vpop.f32.mrb[0].mxu0
        %v1587 = vadd.f32 0.0, %v1586
        %v1588 = vpop.f32.mrb[0].mxu0
        %1589 = vmatprep.mubr.bf16.mxu0 0
        %1590 = vmatmul.mubr.bf16.gmra.mrb[0].mxu0 %v1503
        %v1591 = vpop.f32.mrb[0].mxu0
        %v1592 = vadd.f32 0.0, %v1591
        %v1593 = vpop.f32.mrb[0].mxu0
        %v1594 = vpop.f32.mrb[0].mxu0
        %v1595 = vadd.f32 0.0, %v1594
        %v1596 = vpop.f32.mrb[0].mxu0
        %1597 = vmatprep.mubr.bf16.mxu0 0
        %1598 = vmatmul.mubr.bf16.gmra.mrb[0].mxu0 %v1505
        %v1599 = vpop.f32.mrb[0].mxu0
        %v1600 = vadd.f32 0.0, %v1599
        %v1601 = vpop.f32.mrb[0].mxu0
        %v1602 = vpop.f32.mrb[0].mxu0
        %v1603 = vadd.f32 0.0, %v1602
        %v1604 = vpop.f32.mrb[0].mxu0
        %1605 = vmatprep.mubr.bf16.mxu0 0
        %1606 = vmatmul.mubr.bf16.gmra.mrb[0].mxu0 %v1507
        %v1607 = vpop.f32.mrb[0].mxu0
        %v1608 = vadd.f32 0.0, %v1607
        %v1609 = vpop.f32.mrb[0].mxu0
        %v1610 = vpop.f32.mrb[0].mxu0
        %v1611 = vadd.f32 0.0, %v1610
        %v1612 = vpop.f32.mrb[0].mxu0
        %1613 = vmatprep.mubr.bf16.mxu0 0
        %1614 = vmatmul.mubr.bf16.gmra.mrb[0].mxu0 %v1509
        %v1615 = vpop.f32.mrb[0].mxu0
        %v1616 = vadd.f32 0.0, %v1615
        %v1617 = vpop.f32.mrb[0].mxu0
        %v1618 = vpop.f32.mrb[0].mxu0
        %v1619 = vadd.f32 0.0, %v1618
        %v1620 = vpop.f32.mrb[0].mxu0
        %1621 = vmatprep.mubr.bf16.mxu0 0
        %1622 = vmatmul.mubr.bf16.gmra.mrb[0].mxu0 %v1511
        %v1623 = vpop.f32.mrb[0].mxu0
        %v1624 = vadd.f32 0.0, %v1623
        %v1625 = vpop.f32.mrb[0].mxu0
        %v1626 = vpop.f32.mrb[0].mxu0
        %v1627 = vadd.f32 0.0, %v1626
        %v1628 = vpop.f32.mrb[0].mxu0
        %1629 = vmatprep.mubr.bf16.mxu0 0
        %1630 = vmatmul.mubr.bf16.gmra.mrb[0].mxu0 %v1513
        %v1631 = vpop.f32.mrb[0].mxu0
        %v1632 = vadd.f32 0.0, %v1631
        %v1633 = vpop.f32.mrb[0].mxu0
        %v1634 = vpop.f32.mrb[0].mxu0
        %v1635 = vadd.f32 0.0, %v1634
        %v1636 = vpop.f32.mrb[0].mxu0
        %1637 = vmatprep.mubr.bf16.mxu0 0
        %1638 = vmatmul.mubr.bf16.gmra.mrb[0].mxu0 %v1515
        %v1639 = vpop.f32.mrb[0].mxu0
        %v1640 = vadd.f32 0.0, %v1639
        %v1641 = vpop.f32.mrb[0].mxu0
        %v1642 = vpop.f32.mrb[0].mxu0
        %v1643 = vadd.f32 0.0, %v1642
        %v1644 = vpop.f32.mrb[0].mxu0
        %1645 = vmatprep.mubr.bf16.mxu0 0
        %1646 = vmatmul.mubr.bf16.gmra.mrb[0].mxu0 %v1517
        %v1647 = vpop.f32.mrb[0].mxu0
        %v1648 = vadd.f32 0.0, %v1647
        %v1649 = vpop.f32.mrb[0].mxu0
        %v1650 = vpop.f32.mrb[0].mxu0
        %v1651 = vadd.f32 0.0, %v1650
        %v1652 = vpop.f32.mrb[0].mxu0
        %1653 = vmatprep.mubr.bf16.mxu0 0
        %1654 = vmatmul.mubr.bf16.gmra.mrb[0].mxu0 %v1519
        %v1655 = vpop.f32.mrb[0].mxu0
        %v1656 = vadd.f32 0.0, %v1655
        %v1657 = vpop.f32.mrb[0].mxu0
        %v1658 = vpop.f32.mrb[0].mxu0
        %v1659 = vadd.f32 0.0, %v1658
        %v1660 = vpop.f32.mrb[0].mxu0
        %1661 = vmatprep.mubr.bf16.mxu0 0
        %1662 = vmatmul.mubr.bf16.gmra.mrb[0].mxu0 %v1521
        %v1663 = vpop.f32.mrb[0].mxu0
        %v1664 = vadd.f32 0.0, %v1663
        %v1665 = vpop.f32.mrb[0].mxu0
        %v1666 = vpop.f32.mrb[0].mxu0
        %v1667 = vadd.f32 0.0, %v1666
        %v1668 = vpop.f32.mrb[0].mxu0
        %1669 = vmatprep.mubr.bf16.mxu0 0
        %1670 = vmatmul.mubr.bf16.gmra.mrb[0].mxu0 %v1523
        %v1671 = vpop.f32.mrb[0].mxu0
        %v1672 = vadd.f32 0.0, %v1671
        %v1673 = vpop.f32.mrb[0].mxu0
        %v1674 = vpop.f32.mrb[0].mxu0
        %v1675 = vadd.f32 0.0, %v1674
        %v1676 = vpop.f32.mrb[0].mxu0
        %1677 = vmatprep.mubr.bf16.mxu0 0
        %1678 = vmatmul.mubr.bf16.gmra.mrb[0].mxu0 %v1525
        %v1679 = vpop.f32.mrb[0].mxu0
        %v1680 = vadd.f32 0.0, %v1679
        %v1681 = vpop.f32.mrb[0].mxu0
        %v1682 = vpop.f32.mrb[0].mxu0
        %v1683 = vadd.f32 0.0, %v1682
        %v1684 = vpop.f32.mrb[0].mxu0
        %1685 = vmatprep.mubr.bf16.mxu0 0
        %1686 = vmatmul.mubr.bf16.gmra.mrb[0].mxu0 %v1527
        %v1687 = vpop.f32.mrb[0].mxu0
        %v1688 = vadd.f32 0.0, %v1687
        %v1689 = vpop.f32.mrb[0].mxu0
        %v1690 = vpop.f32.mrb[0].mxu0
        %v1691 = vadd.f32 0.0, %v1690
        %v1692 = vpop.f32.mrb[0].mxu0
        %1693 = vdwg.mxu0
        %v1694 = vstv %s226
        %v1695 = vmul.f32 %v1568, %v1694
        %v1696 = vmul.f32 %v1571, %v1694
        %v1697 = vmul.f32 %v1576, %v1694
        %v1698 = vmul.f32 %v1579, %v1694
        %v1699 = vmul.f32 %v1584, %v1694
        %v1700 = vmul.f32 %v1587, %v1694
        %v1701 = vmul.f32 %v1592, %v1694
        %v1702 = vmul.f32 %v1595, %v1694
        %v1703 = vmul.f32 %v1600, %v1694
        %v1704 = vmul.f32 %v1603, %v1694
        %v1705 = vmul.f32 %v1608, %v1694
        %v1706 = vmul.f32 %v1611, %v1694
        %v1707 = vmul.f32 %v1616, %v1694
        %v1708 = vmul.f32 %v1619, %v1694
        %v1709 = vmul.f32 %v1624, %v1694
        %v1710 = vmul.f32 %v1627, %v1694
        %v1711 = vmul.f32 %v1632, %v1694
        %v1712 = vmul.f32 %v1635, %v1694
        %v1713 = vmul.f32 %v1640, %v1694
        %v1714 = vmul.f32 %v1643, %v1694
        %v1715 = vmul.f32 %v1648, %v1694
        %v1716 = vmul.f32 %v1651, %v1694
        %v1717 = vmul.f32 %v1656, %v1694
        %v1718 = vmul.f32 %v1659, %v1694
        %v1719 = vmul.f32 %v1664, %v1694
        %v1720 = vmul.f32 %v1667, %v1694
        %v1721 = vmul.f32 %v1672, %v1694
        %v1722 = vmul.f32 %v1675, %v1694
        %v1723 = vmul.f32 %v1680, %v1694
        %v1724 = vmul.f32 %v1683, %v1694
        %v1725 = vmul.f32 %v1688, %v1694
        %v1726 = vmul.f32 %v1691, %v1694
        %v1727 = vld [vmem:[%s3] sm:$0x1]
        %v1729 = vlaneseq
        %v1730 = vshrl.u32 %v1729, 7
        %v1731 = vsub.s32 0, %v1730
        %v1732 = vrot.slane %v1727, %v1731
        %v1734 = vadd.f32 %v1695, %v1732
        %v1735 = vadd.f32 %v1696, %v1732
        %v1736 = vadd.f32 %v1697, %v1732
        %v1737 = vadd.f32 %v1698, %v1732
        %v1738 = vadd.f32 %v1699, %v1732
        %v1739 = vadd.f32 %v1700, %v1732
        %v1740 = vadd.f32 %v1701, %v1732
        %v1741 = vadd.f32 %v1702, %v1732
        %v1742 = vadd.f32 %v1703, %v1732
        %v1743 = vadd.f32 %v1704, %v1732
        %v1744 = vadd.f32 %v1705, %v1732
        %v1745 = vadd.f32 %v1706, %v1732
        %v1746 = vadd.f32 %v1707, %v1732
        %v1747 = vadd.f32 %v1708, %v1732
        %v1748 = vadd.f32 %v1709, %v1732
        %v1749 = vadd.f32 %v1710, %v1732
        %v1750 = vadd.f32 %v1711, %v1732
        %v1751 = vadd.f32 %v1712, %v1732
        %v1752 = vadd.f32 %v1713, %v1732
        %v1753 = vadd.f32 %v1714, %v1732
        %v1754 = vadd.f32 %v1715, %v1732
        %v1755 = vadd.f32 %v1716, %v1732
        %v1756 = vadd.f32 %v1717, %v1732
        %v1757 = vadd.f32 %v1718, %v1732
        %v1758 = vadd.f32 %v1719, %v1732
        %v1759 = vadd.f32 %v1720, %v1732
        %v1760 = vadd.f32 %v1721, %v1732
        %v1761 = vadd.f32 %v1722, %v1732
        %v1762 = vadd.f32 %v1723, %v1732
        %v1763 = vadd.f32 %v1724, %v1732
        %v1764 = vadd.f32 %v1725, %v1732
        %v1765 = vadd.f32 %v1726, %v1732
        %v1766 = vmax.f32 %v1734, 0.0
        %v1767 = vmax.f32 %v1735, 0.0
        %v1768 = vmax.f32 %v1736, 0.0
        %v1769 = vmax.f32 %v1737, 0.0
        %v1770 = vmax.f32 %v1738, 0.0
        %v1771 = vmax.f32 %v1739, 0.0
        %v1772 = vmax.f32 %v1740, 0.0
        %v1773 = vmax.f32 %v1741, 0.0
        %v1774 = vmax.f32 %v1742, 0.0
        %v1775 = vmax.f32 %v1743, 0.0
        %v1776 = vmax.f32 %v1744, 0.0
        %v1777 = vmax.f32 %v1745, 0.0
        %v1778 = vmax.f32 %v1746, 0.0
        %v1779 = vmax.f32 %v1747, 0.0
        %v1780 = vmax.f32 %v1748, 0.0
        %v1781 = vmax.f32 %v1749, 0.0
        %v1782 = vmax.f32 %v1750, 0.0
        %v1783 = vmax.f32 %v1751, 0.0
        %v1784 = vmax.f32 %v1752, 0.0
        %v1785 = vmax.f32 %v1753, 0.0
        %v1786 = vmax.f32 %v1754, 0.0
        %v1787 = vmax.f32 %v1755, 0.0
        %v1788 = vmax.f32 %v1756, 0.0
        %v1789 = vmax.f32 %v1757, 0.0
        %v1790 = vmax.f32 %v1758, 0.0
        %v1791 = vmax.f32 %v1759, 0.0
        %v1792 = vmax.f32 %v1760, 0.0
        %v1793 = vmax.f32 %v1761, 0.0
        %v1794 = vmax.f32 %v1762, 0.0
        %v1795 = vmax.f32 %v1763, 0.0
        %v1796 = vmax.f32 %v1764, 0.0
        %v1797 = vmax.f32 %v1765, 0.0
        %1798 = vst [vmem:[%s218] sm:$0xff] %v1766
        %1799 = vst [vmem:[%s218 + $0x8] sm:$0xff] %v1767
        %1800 = vst [vmem:[%s218 + $0x10] sm:$0xff] %v1768
        %1801 = vst [vmem:[%s218 + $0x18] sm:$0xff] %v1769
        %1802 = vst [vmem:[%s218 + $0x20] sm:$0xff] %v1770
        %1803 = vst [vmem:[%s218 + $0x28] sm:$0xff] %v1771
        %1804 = vst [vmem:[%s218 + $0x30] sm:$0xff] %v1772
        %1805 = vst [vmem:[%s218 + $0x38] sm:$0xff] %v1773
        %1806 = vst [vmem:[%s218 + $0x40] sm:$0xff] %v1774
        %1807 = vst [vmem:[%s218 + $0x48] sm:$0xff] %v1775
        %1808 = vst [vmem:[%s218 + $0x50] sm:$0xff] %v1776
        %1809 = vst [vmem:[%s218 + $0x58] sm:$0xff] %v1777
        %1810 = vst [vmem:[%s218 + $0x60] sm:$0xff] %v1778
        %1811 = vst [vmem:[%s218 + $0x68] sm:$0xff] %v1779
        %1812 = vst [vmem:[%s218 + $0x70] sm:$0xff] %v1780
        %1813 = vst [vmem:[%s218 + $0x78] sm:$0xff] %v1781
        %1814 = vst [vmem:[%s218 + $0x80] sm:$0xff] %v1782
        %1815 = vst [vmem:[%s218 + $0x88] sm:$0xff] %v1783
        %1816 = vst [vmem:[%s218 + $0x90] sm:$0xff] %v1784
        %1817 = vst [vmem:[%s218 + $0x98] sm:$0xff] %v1785
        %1818 = vst [vmem:[%s218 + $0xa0] sm:$0xff] %v1786
        %1819 = vst [vmem:[%s218 + $0xa8] sm:$0xff] %v1787
        %1820 = vst [vmem:[%s218 + $0xb0] sm:$0xff] %v1788
        %1821 = vst [vmem:[%s218 + $0xb8] sm:$0xff] %v1789
        %1822 = vst [vmem:[%s218 + $0xc0] sm:$0xff] %v1790
        %1823 = vst [vmem:[%s218 + $0xc8] sm:$0xff] %v1791
        %1824 = vst [vmem:[%s218 + $0xd0] sm:$0xff] %v1792
        %1825 = vst [vmem:[%s218 + $0xd8] sm:$0xff] %v1793
        %1826 = vst [vmem:[%s218 + $0xe0] sm:$0xff] %v1794
        %1827 = vst [vmem:[%s218 + $0xe8] sm:$0xff] %v1795
        %1828 = vst [vmem:[%s218 + $0xf0] sm:$0xff] %v1796
        %1829 = vst [vmem:[%s218 + $0xf8] sm:$0xff] %v1797
        %s1830 = sand.u32 %s130, 1
        %s1831 = scalar_lea.sflag [#allocation3], %s1830
        %s1832 = sand.u32 %s130, 1
        %s1833 = smul.addr %s1832, 256
        %s1834 = scalar_lea.vmem [#allocation5], %s1833
        // Predicated region
        $region41: #{tpu_custom_call.1} parent=35 // pred_check
          %p1835 = pneg %p140
        $region42: #{tpu_custom_call.1} parent=35 // pred_check_branch
          %1837 = sbr.rel (%p1835) target = $region44
        $region43: #{tpu_custom_call.1} parent=35 // pred_region
          %s1838 = smul.u32 16, %s24
          %s1840 = ssub.s32 4096, 4096
          %1841 = vsyncadd %s1831, %s1840
          %s1842 = smul.addr %s1838, 2
          %s1843 = smul.addr %s23, 32
          %s1844 = sadd.s32 %s1842, %s1843
          %s1845 = smul.addr %s1844, 128
          %s1846 = scalar_lea.hbm %s4, %s1845
          %s1847 = sshll.u32 %s1834, 4
          %s1848 = int_to_ptr.vmem [resolvable:$true] %s1847
          %1853 = dma.vmem_to_hbm [thread:$0]  %s1848, 4096, %s1846, %s1831, 128, 128, 8
        $region44: #{tpu_custom_call.1} parent=35 // pred_fallthru
          _
      $region36: #{tpu_custom_call.1} parent=5 // pred_fallthru
        _
      %p1854 = scmp.le.s32.totalorder 2, %s14
      // Predicated region
      $region45: #{tpu_custom_call.1} parent=5 // pred_check
        %p1855 = pneg %p1854
      $region46: #{tpu_custom_call.1} parent=5 // pred_check_branch
        %1857 = sbr.rel (%p1855) target = $region48
      $region47: #{tpu_custom_call.1} parent=5 // pred_region
        %s1858 = ssub.s32 %s14, 2
        // Predicated region
        $region49: #{tpu_custom_call.1} parent=47 // pred_check
          %p1859 = pneg %p146
        $region50: #{tpu_custom_call.1} parent=47 // pred_check_branch
          %1861 = sbr.rel (%p1859) target = $region52
        $region51: #{tpu_custom_call.1} parent=47 // pred_region
          %s1862 = sand.u32 %s131, 1
          %s1863 = scalar_lea.sflag [#allocation3], %s1862
          %s1864 = sand.u32 %s131, 1
          %s1865 = smul.addr %s1864, 256
          %s1866 = scalar_lea.vmem [#allocation5], %s1865
          %1867 = dma.done %s1863, 4096
        $region52: #{tpu_custom_call.1} parent=47 // pred_fallthru
          _
      $region48: #{tpu_custom_call.1} parent=5 // pred_fallthru
        _
    $region6: #{tpu_custom_call.1} parent=1 // loop_footer
      %s18 = sadd.s32 1, %s14
    $region7: #{tpu_custom_call.1} parent=1 // loop_footer_branch
      %13 = sbr.rel target = $region3
    $region8: #{tpu_custom_call.1} parent=1 // loop_exit
      _
    %1868 = vsyncpa [#allocation3], 1
    %s1869 = scalar_lea.sflag [#allocation3], 1
    %1870 = vsyncpa %s1869, 1
    %1871 = vsyncpa [#allocation4], 1
    %s1872 = scalar_lea.sflag [#allocation4], 1
    %1873 = vsyncpa %s1872, 1

</llo_original>
